<compile_context>
chip_gen: v5e
topology: v5e:2x2
jax: 0.10.0
libtpu: 0.0.40
codegen_flags: <defaults>
</compile_context>

<pallas_src>
import functools

import jax
import jax.numpy as jnp
import numpy as np
from jax.experimental import pallas as pl
from jax.experimental.pallas import tpu as pltpu


# ----------------------------------------------------------------------------
# fused window-attention kernel (one grid step = Wb windows)
# ----------------------------------------------------------------------------
def _window_attention_kernel(x_ref, wqkv_ref, bias_ref, wout_ref, o_ref,
                             *, heads, dim_head):
    wb, n, d = x_ref.shape            # Wb windows, N tokens / window, D channels
    r = wb * n                        # rows handled by this grid step
    mm_dtype = wqkv_ref.dtype         # MXU operand dtype (f32 or bf16)

    # ---- QKV projection: ONE (r, D) @ (D, 3D) matmul for all heads & windows.
    # (attention scale already folded into the Q columns of wqkv by the wrapper)
    x = x_ref[...].reshape(r, d).astype(mm_dtype)        # leading-dim merge: free
    qkv = jnp.dot(x, wqkv_ref[...], preferred_element_type=jnp.float32)
    qkv = qkv.reshape(wb, n, 3 * d)                      # leading-dim split: free

    # ---- stack heads onto the batch axis (leading-dim concat, no lane relayout):
    # batch index g = h * Wb + b, so bias[h] broadcasts after a free reshape.
    def stacked(col0):
        return jnp.concatenate(
            [qkv[:, :, col0 + h * dim_head: col0 + (h + 1) * dim_head]
             for h in range(heads)], axis=0)             # (heads*Wb, N, dh)

    q = stacked(0).astype(mm_dtype)
    k = stacked(d).astype(mm_dtype)
    v = stacked(2 * d).astype(mm_dtype)

    # ---- ONE batched score einsum, ONE softmax slab, ONE batched PV einsum.
    sim = jnp.einsum('gnd,gmd->gnm', q, k, preferred_element_type=jnp.float32)
    sim = sim.reshape(heads, wb, n, n) + bias_ref[...][:, None]   # rel-pos bias
    sim = sim - jnp.max(sim, axis=-1, keepdims=True)
    p = jnp.exp(sim)
    # denominator on the EUP (approx reciprocal: separate VLIW slot, off the VALU)
    p = p * pl.reciprocal(jnp.sum(p, axis=-1, keepdims=True), approx=True)
    p = p.reshape(heads * wb, n, n).astype(mm_dtype)

    out = jnp.einsum('gnm,gmd->gnd', p, v, preferred_element_type=jnp.float32)

    # ---- un-stack heads (free leading-dim views) + head-major lane concat,
    # then ONE (r, D) @ (D, D) output projection.
    out = jnp.concatenate(
        [out[h * wb:(h + 1) * wb].reshape(r, dim_head) for h in range(heads)],
        axis=-1)                                         # (r, D), head-major columns
    y = jnp.dot(out.astype(mm_dtype), wout_ref[...],
                preferred_element_type=jnp.float32)
    o_ref[...] = y.reshape(wb, n, d).astype(o_ref.dtype)


# ----------------------------------------------------------------------------
# block-size heuristics
# ----------------------------------------------------------------------------
def _num_tensorcores():
    """Best-effort TensorCore count of device 0 (v4/v5p megacore & v7x -> 2, else 1)."""
    try:
        dev = jax.devices()[0]
    except Exception:
        return 1
    for attr in ("num_cores", "core_count"):
        val = getattr(dev, attr, None)
        if isinstance(val, int) and val >= 1:
            return val
    kind = str(getattr(dev, "device_kind", "")).lower()
    if any(tag in kind for tag in ("v4", "v5p", "v7", "tpu7")):
        return 2
    return 1


def _pick_window_batch(num_windows, tokens_per_window, target_rows, num_cores):
    """Largest divisor Wb of num_windows with Wb * N <= target_rows.

    Only when there is more than one TensorCore do we force multiple grid steps
    (>= 2 per core) so the "parallel" axis can be sharded across cores; on
    single-TC chips (v5e/v6e) one big block per step amortizes the ~0.35us/step
    pipeline overhead best and maximizes MXU M.
    """
    cap = max(1, target_rows // max(1, tokens_per_window))
    if num_cores > 1:
        min_steps = 2 * num_cores
        if num_windows >= min_steps:
            cap = min(cap, max(1, num_windows // min_steps))
    best = 1
    for cand in range(1, num_windows + 1):
        if cand <= cap and num_windows % cand == 0:
            best = cand
    return best


# ----------------------------------------------------------------------------
# wrapper: Attention.forward
# ----------------------------------------------------------------------------
def window_attention(x8, params, *, compute_dtype=jnp.float32, target_rows=4096):
    """Forward pass of the `Attention` module.

    x8: (b, x, y, z, w1, w2, w3, d) window-partitioned activations -> same shape.
    params: {"wqkv": (d, 3d), "wout": (d, d), "bias": (heads, N, N)}.
    compute_dtype: activation-I/O + MXU-operand dtype (bf16 recommended on v6e/v7x,
      keep f32 on v5e).  Softmax / score math is always f32.
    """
    b, gx, gy, gz, w1, w2, w3, d = x8.shape
    n = w1 * w2 * w3
    nw = b * gx * gy * gz
    heads = params["bias"].shape[0]
    dh = d // heads
    scale = float(dh) ** -0.5

    # fold the attention scale into the Q columns of wqkv (done once, outside kernel)
    wqkv = params["wqkv"].astype(jnp.float32)
    wqkv = wqkv.at[:, :d].multiply(scale).astype(compute_dtype)
    wout = params["wout"].astype(compute_dtype)
    bias = params["bias"].astype(jnp.float32)     # stays f32 (added to f32 scores)

    # (NW, N, D) activations; bf16 I/O halves the bytes moved on v6e/v7x.
    xw = x8.reshape(nw, n, d).astype(compute_dtype)

    wb = _pick_window_batch(nw, n, target_rows, _num_tensorcores())
    grid = (nw // wb,)

    kernel = functools.partial(_window_attention_kernel, heads=heads, dim_head=dh)

    def _resident(shape):                         # grid-invariant (resident) operand
        return pl.BlockSpec(shape, lambda i, _nd=len(shape): (0,) * _nd)

    itemsize = jnp.dtype(compute_dtype).itemsize
    cost = pl.CostEstimate(
        flops=int(nw * (2 * n * d * 4 * d + 4 * n * n * d)),
        transcendentals=int(nw * heads * n * n),
        bytes_accessed=int(2 * nw * n * d * itemsize
                           + 4 * d * d * itemsize + heads * n * n * 4),
    )

    out = pl.pallas_call(
        kernel,
        out_shape=jax.ShapeDtypeStruct((nw, n, d), compute_dtype),
        grid=grid,
        in_specs=[
            pl.BlockSpec((wb, n, d), lambda i: (i, 0, 0)),
            _resident((d, 3 * d)),
            _resident((heads, n, n)),
            _resident((d, d)),
        ],
        out_specs=pl.BlockSpec((wb, n, d), lambda i: (i, 0, 0)),
        compiler_params=pltpu.CompilerParams(
            dimension_semantics=("parallel",),
            vmem_limit_bytes=32 * 1024 * 1024,
        ),
        cost_estimate=cost,
    )(xw, wqkv, bias, wout)

    return out.reshape(x8.shape).astype(x8.dtype)


# ----------------------------------------------------------------------------
# relative-position bias (matches the torch module's rel_pos_indices + Embedding)
# ----------------------------------------------------------------------------
def rel_pos_bias_from_table(table, window_size):
    w1, w2, w3 = window_size
    g = jnp.stack(jnp.meshgrid(jnp.arange(w1), jnp.arange(w2), jnp.arange(w3),
                               indexing="ij"))                  # (3, w1, w2, w3)
    g = g.reshape(3, -1).T                                      # (N, 3)
    rel = g[:, None, :] - g[None, :, :]
    rel = rel + jnp.array([w1 - 1, w2 - 1, w3 - 1])
    strides = jnp.array([(2 * w2 - 1) * (2 * w3 - 1), 2 * w3 - 1, 1])
    idx = (rel * strides).sum(-1)                               # (N, N)
    return table[idx].transpose(2, 0, 1)                        # 'i j h -> h i j'


def make_params(key, dim, dim_head, window_size):
    heads = dim // dim_head
    w1, w2, w3 = window_size
    n_rel = (2 * w1 - 1) * (2 * w2 - 1) * (2 * w3 - 1)
    k0, k1, k2 = jax.random.split(key, 3)
    wqkv = (0.05 * jax.random.normal(k0, (dim, 3 * dim))).astype(jnp.float32)
    wout = (0.05 * jax.random.normal(k1, (dim, dim))).astype(jnp.float32)
    table = (0.02 * jax.random.normal(k2, (n_rel, heads))).astype(jnp.float32)
    return {"wqkv": wqkv, "wout": wout,
            "bias": rel_pos_bias_from_table(table, window_size)}


# ----------------------------------------------------------------------------
# pure-JAX reference (mirrors Attention.forward exactly, for correctness check)
# ----------------------------------------------------------------------------
def reference_attention(x8, params):
    b, gx, gy, gz, w1, w2, w3, d = x8.shape
    heads = params["bias"].shape[0]
    dh = d // heads
    n = w1 * w2 * w3
    x = x8.reshape(-1, n, d).astype(jnp.float32)
    qkv = x @ params["wqkv"]
    q, k, v = qkv[..., :d], qkv[..., d:2 * d], qkv[..., 2 * d:]
    split = lambda t: t.reshape(-1, n, heads, dh).transpose(0, 2, 1, 3)
    q = split(q) * (dh ** -0.5)
    k, v = split(k), split(v)
    sim = jnp.einsum('bhid,bhjd->bhij', q, k) + params["bias"][None]
    attn = jax.nn.softmax(sim, axis=-1)
    o = jnp.einsum('bhij,bhjd->bhid', attn, v)
    o = o.transpose(0, 2, 1, 3).reshape(-1, n, d)               # 'b h n d -> b n (h d)'
    o = o @ params["wout"]
    return o.reshape(x8.shape)


# ----------------------------------------------------------------------------
if __name__ == "__main__":
    key = jax.random.PRNGKey(0)
    dim, dim_head = 32, 16               # heads = 2
    window_size = (2, 2, 2)              # N = 8 tokens per window
    B, gx, gy, gz = 2, 2, 2, 2           # NW = 16 windows

    kx, kp = jax.random.split(key)
    x = jax.random.normal(kx, (B, gx, gy, gz, *window_size, dim), dtype=jnp.float32)
    params = make_params(kp, dim, dim_head, window_size)

    ref = reference_attention(x, params)

    # f32 path (near-exact; only the approx EUP reciprocal differs from the reference)
    fwd = jax.jit(functools.partial(window_attention, compute_dtype=jnp.float32))
    out = jax.block_until_ready(fwd(x, params))
    assert out.shape == x.shape
    np.testing.assert_allclose(np.asarray(out), np.asarray(ref), rtol=2e-3, atol=5e-4)

    # bf16 activation-I/O + bf16 MXU operands (recommended on v6e/v7x), f32 softmax.
    fwd_bf16 = jax.jit(functools.partial(window_attention, compute_dtype=jnp.bfloat16))
    out_bf16 = jax.block_until_ready(fwd_bf16(x, params))
    np.testing.assert_allclose(np.asarray(out_bf16), np.asarray(ref),
                               rtol=5e-2, atol=2e-2)

    print("KERNEL_OK")
</pallas_src>

<mosaic_0001>
module attributes {stable_mosaic.version = 11 : i64} {
  func.func @_window_attention_kernel(%arg0: i32, %arg1: memref<16x8x32xf32, #tpu.memory_space<vmem>>, %arg2: memref<32x96xf32, #tpu.memory_space<vmem>>, %arg3: memref<2x8x8xf32, #tpu.memory_space<vmem>>, %arg4: memref<32x32xf32, #tpu.memory_space<vmem>>, %arg5: memref<16x8x32xf32, #tpu.memory_space<vmem>>) attributes {dimension_semantics = [#tpu.dimension_semantics<parallel>], iteration_bounds = array<i64: 1>, scalar_prefetch = 0 : i64, scratch_operands = 0 : i64, tpu.core_type = #tpu.core_type<tc>, window_params = [{transform_indices = @transform_0, window_bounds = array<i64: 16, 8, 32>}, {pipeline_mode = #tpu.pipeline_mode<synchronous>, transform_indices = @transform_1, window_bounds = array<i64: 32, 96>}, {pipeline_mode = #tpu.pipeline_mode<synchronous>, transform_indices = @transform_2, window_bounds = array<i64: 2, 8, 8>}, {pipeline_mode = #tpu.pipeline_mode<synchronous>, transform_indices = @transform_3, window_bounds = array<i64: 32, 32>}, {transform_indices = @transform_4, window_bounds = array<i64: 16, 8, 32>}]} {
    %c0 = arith.constant 0 : index
    %c0_0 = arith.constant 0 : index
    %c0_1 = arith.constant 0 : index
    %0 = vector.load %arg1[%c0, %c0_0, %c0_1] : memref<16x8x32xf32, #tpu.memory_space<vmem>>, vector<16x8x32xf32>
    %1 = vector.shape_cast %0 : vector<16x8x32xf32> to vector<128x32xf32>
    %c0_2 = arith.constant 0 : index
    %c0_3 = arith.constant 0 : index
    %2 = vector.load %arg2[%c0_2, %c0_3] : memref<32x96xf32, #tpu.memory_space<vmem>>, vector<32x96xf32>
    %cst = arith.constant dense<0.000000e+00> : vector<128x96xf32>
    %3 = tpu.matmul %1, %2, %cst {dimension_numbers = #tpu.dot_dimension_numbers<[1], [0], [0], [1], [0, 0, 1, 1], [], []>} : vector<128x32xf32>, vector<32x96xf32>, vector<128x96xf32> -> vector<128x96xf32>
    %4 = vector.shape_cast %3 : vector<128x96xf32> to vector<16x8x96xf32>
    %5 = vector.extract_strided_slice %4 {offsets = [0, 0, 0], sizes = [16, 8, 16], strides = [1, 1, 1]} : vector<16x8x96xf32> to vector<16x8x16xf32>
    %6 = vector.extract_strided_slice %4 {offsets = [0, 0, 16], sizes = [16, 8, 16], strides = [1, 1, 1]} : vector<16x8x96xf32> to vector<16x8x16xf32>
    %7 = tpu.concatenate %5, %6 in 0 : vector<16x8x16xf32>, vector<16x8x16xf32> -> vector<32x8x16xf32>
    %8 = vector.extract_strided_slice %4 {offsets = [0, 0, 32], sizes = [16, 8, 16], strides = [1, 1, 1]} : vector<16x8x96xf32> to vector<16x8x16xf32>
    %9 = vector.extract_strided_slice %4 {offsets = [0, 0, 48], sizes = [16, 8, 16], strides = [1, 1, 1]} : vector<16x8x96xf32> to vector<16x8x16xf32>
    %10 = tpu.concatenate %8, %9 in 0 : vector<16x8x16xf32>, vector<16x8x16xf32> -> vector<32x8x16xf32>
    %11 = vector.extract_strided_slice %4 {offsets = [0, 0, 64], sizes = [16, 8, 16], strides = [1, 1, 1]} : vector<16x8x96xf32> to vector<16x8x16xf32>
    %12 = vector.extract_strided_slice %4 {offsets = [0, 0, 80], sizes = [16, 8, 16], strides = [1, 1, 1]} : vector<16x8x96xf32> to vector<16x8x16xf32>
    %13 = tpu.concatenate %11, %12 in 0 : vector<16x8x16xf32>, vector<16x8x16xf32> -> vector<32x8x16xf32>
    "tpu.trace_start"() <{level = 10 : i32, message = "gnd,gmd->gnm"}> : () -> ()
    %cst_4 = arith.constant dense<0.000000e+00> : vector<32x8x8xf32>
    %14 = tpu.matmul %7, %10, %cst_4 {dimension_numbers = #tpu.dot_dimension_numbers<[2], [2], [1], [1], [0, 0, 0, 1, 1, 1], [0], [0]>} : vector<32x8x16xf32>, vector<32x8x16xf32>, vector<32x8x8xf32> -> vector<32x8x8xf32>
    "tpu.trace_stop"() : () -> ()
    %15 = vector.shape_cast %14 : vector<32x8x8xf32> to vector<2x16x8x8xf32>
    %c0_5 = arith.constant 0 : index
    %c0_6 = arith.constant 0 : index
    %c0_7 = arith.constant 0 : index
    %16 = vector.load %arg3[%c0_5, %c0_6, %c0_7] : memref<2x8x8xf32, #tpu.memory_space<vmem>>, vector<2x8x8xf32>
    %17 = vector.shape_cast %16 : vector<2x8x8xf32> to vector<2x1x8x8xf32>
    %18 = vector.broadcast %17 : vector<2x1x8x8xf32> to vector<2x16x8x8xf32>
    %19 = arith.addf %15, %18 : vector<2x16x8x8xf32>
    %cst_8 = arith.constant dense<0xFF800000> : vector<2x16x8xf32>
    %20 = vector.multi_reduction <maximumf>, %19, %cst_8 [3] : vector<2x16x8x8xf32> to vector<2x16x8xf32>
    %21 = vector.shape_cast %20 : vector<2x16x8xf32> to vector<2x16x8x1xf32>
    %22 = vector.broadcast %21 : vector<2x16x8x1xf32> to vector<2x16x8x8xf32>
    %23 = arith.subf %19, %22 : vector<2x16x8x8xf32>
    %24 = math.exp %23 : vector<2x16x8x8xf32>
    %cst_9 = arith.constant dense<0.000000e+00> : vector<2x16x8xf32>
    %25 = vector.multi_reduction <add>, %24, %cst_9 [3] : vector<2x16x8x8xf32> to vector<2x16x8xf32>
    %26 = vector.shape_cast %25 : vector<2x16x8xf32> to vector<2x16x8x1xf32>
    %27 = tpu.reciprocal %26 {approx = true} : vector<2x16x8x1xf32> -> vector<2x16x8x1xf32>
    %28 = vector.broadcast %27 : vector<2x16x8x1xf32> to vector<2x16x8x8xf32>
    %29 = arith.mulf %24, %28 : vector<2x16x8x8xf32>
    %30 = vector.shape_cast %29 : vector<2x16x8x8xf32> to vector<32x8x8xf32>
    "tpu.trace_start"() <{level = 10 : i32, message = "gnm,gmd->gnd"}> : () -> ()
    %cst_10 = arith.constant dense<0.000000e+00> : vector<32x8x16xf32>
    %31 = tpu.matmul %30, %13, %cst_10 {dimension_numbers = #tpu.dot_dimension_numbers<[2], [1], [1], [2], [0, 0, 0, 1, 1, 2], [0], [0]>} : vector<32x8x8xf32>, vector<32x8x16xf32>, vector<32x8x16xf32> -> vector<32x8x16xf32>
    "tpu.trace_stop"() : () -> ()
    %32 = vector.extract_strided_slice %31 {offsets = [0, 0, 0], sizes = [16, 8, 16], strides = [1, 1, 1]} : vector<32x8x16xf32> to vector<16x8x16xf32>
    %33 = vector.shape_cast %32 : vector<16x8x16xf32> to vector<128x16xf32>
    %34 = vector.extract_strided_slice %31 {offsets = [16, 0, 0], sizes = [16, 8, 16], strides = [1, 1, 1]} : vector<32x8x16xf32> to vector<16x8x16xf32>
    %35 = vector.shape_cast %34 : vector<16x8x16xf32> to vector<128x16xf32>
    %36 = tpu.concatenate %33, %35 in 1 : vector<128x16xf32>, vector<128x16xf32> -> vector<128x32xf32>
    %c0_11 = arith.constant 0 : index
    %c0_12 = arith.constant 0 : index
    %37 = vector.load %arg4[%c0_11, %c0_12] : memref<32x32xf32, #tpu.memory_space<vmem>>, vector<32x32xf32>
    %cst_13 = arith.constant dense<0.000000e+00> : vector<128x32xf32>
    %38 = tpu.matmul %36, %37, %cst_13 {dimension_numbers = #tpu.dot_dimension_numbers<[1], [0], [0], [1], [0, 0, 1, 1], [], []>} : vector<128x32xf32>, vector<32x32xf32>, vector<128x32xf32> -> vector<128x32xf32>
    %39 = vector.shape_cast %38 : vector<128x32xf32> to vector<16x8x32xf32>
    %c0_14 = arith.constant 0 : index
    %c0_15 = arith.constant 0 : index
    %c0_16 = arith.constant 0 : index
    %40 = vector.load %arg5[%c0_14, %c0_15, %c0_16] : memref<16x8x32xf32, #tpu.memory_space<vmem>>, vector<16x8x32xf32>
    tpu.vector_store %arg5[%c0_14, %c0_15, %c0_16], %39 {strides = array<i32>} : memref<16x8x32xf32, #tpu.memory_space<vmem>>, vector<16x8x32xf32>,
    return
  }
  func.func @transform_0(%arg0: i32) -> (i32, i32, i32) {
    %c0_i32 = arith.constant 0 : i32
    %c0_i32_0 = arith.constant 0 : i32
    %c0_i32_1 = arith.constant 0 : i32
    return %arg0, %c0_i32, %c0_i32_0 : i32, i32, i32
  }
  func.func @transform_1(%arg0: i32) -> (i32, i32) {
    %c0_i32 = arith.constant 0 : i32
    %c0_i32_0 = arith.constant 0 : i32
    %c0_i32_1 = arith.constant 0 : i32
    return %c0_i32, %c0_i32_0 : i32, i32
  }
  func.func @transform_2(%arg0: i32) -> (i32, i32, i32) {
    %c0_i32 = arith.constant 0 : i32
    %c0_i32_0 = arith.constant 0 : i32
    %c0_i32_1 = arith.constant 0 : i32
    %c0_i32_2 = arith.constant 0 : i32
    return %c0_i32, %c0_i32_0, %c0_i32_1 : i32, i32, i32
  }
  func.func @transform_3(%arg0: i32) -> (i32, i32) {
    %c0_i32 = arith.constant 0 : i32
    %c0_i32_0 = arith.constant 0 : i32
    %c0_i32_1 = arith.constant 0 : i32
    return %c0_i32, %c0_i32_0 : i32, i32
  }
  func.func @transform_4(%arg0: i32) -> (i32, i32, i32) {
    %c0_i32 = arith.constant 0 : i32
    %c0_i32_0 = arith.constant 0 : i32
    %c0_i32_1 = arith.constant 0 : i32
    return %arg0, %c0_i32, %c0_i32_0 : i32, i32, i32
  }
}

</mosaic_0001>

<llo_original>
// kernel: window_attention.1
$region0: #{window_attention.1}
  #allocation0 [shape = 'u32[]', space=smem, size = 0x4, offset = 0x4, fixed_abs, tag = 'smem constant byte address 0x4 - core index']
  #allocation1 [shape = 'u32[72,128]{1,0:T(1,128)}', space=vmem, size = 0x9000, scoped, tag = 'internal scratch']
  %s0 = inlined_call_operand.vmem [shape: f32[16,8,32], index: 0, kind: input, shape index: {}]
  %s1 = inlined_call_operand.vmem [shape: f32[32,96], index: 1, kind: input, shape index: {}]
  %s2 = inlined_call_operand.vmem [shape: f32[2,8,8], index: 2, kind: input, shape index: {}]
  %s3 = inlined_call_operand.vmem [shape: f32[32,32], index: 3, kind: input, shape index: {}]
  %s4 = inlined_call_operand.hbm [shape: f32[16,8,32], index: 4, kind: output, shape index: {}]
  %s5 = sld [smem:[#allocation0]]
  $region26: #{window_attention.1} parent=0
    _
  %s7 = ssub.s32 1, %s5
  %s8 = scalar_select 0, %s7, %s5
  $region1: #{window_attention.1} parent=0
    #allocation2 [shape = 'u8[65536]{0}', space=vmem, size = 0x10000, scoped, tag = 'output window, operand 0, single buffered']
    #allocation3 [shape = 's32[1]{0}', space=sflag, size = 0x4, scoped, tag = 'scoped memory for window_attention.1']
    %9 = vsyncpa [#allocation3], 0
    // Predicated region
    $region2: #{window_attention.1} parent=1 // pred_check
      _
    $region3: #{window_attention.1} parent=1 // pred_check_branch
      %11 = sbr.rel (0) target = $region5
    $region4: #{window_attention.1} parent=1 // pred_region
      _
    $region5: #{window_attention.1} parent=1 // pred_fallthru
      _
    // Predicated region
    $region6: #{window_attention.1} parent=1 // pred_check
      _
    $region7: #{window_attention.1} parent=1 // pred_check_branch
      %13 = sbr.rel (0) target = $region9
    $region8: #{window_attention.1} parent=1 // pred_region
      _
    $region9: #{window_attention.1} parent=1 // pred_fallthru
      _
    // Predicated region
    $region10: #{window_attention.1} parent=1 // pred_check
      _
    $region11: #{window_attention.1} parent=1 // pred_check_branch
      %15 = sbr.rel (0) target = $region13
    $region12: #{window_attention.1} parent=1 // pred_region
      _
    $region13: #{window_attention.1} parent=1 // pred_fallthru
      _
    // Predicated region
    $region14: #{window_attention.1} parent=1 // pred_check
      _
    $region15: #{window_attention.1} parent=1 // pred_check_branch
      %17 = sbr.rel (0) target = $region17
    $region16: #{window_attention.1} parent=1 // pred_region
      _
    $region17: #{window_attention.1} parent=1 // pred_fallthru
      _
    %v18 = vld [vmem:[%s0] sm:$0xff]
    %v19 = vld [vmem:[%s0 + $0x8] sm:$0xff]
    %v20 = vld [vmem:[%s0 + $0x10] sm:$0xff]
    %v21 = vld [vmem:[%s0 + $0x18] sm:$0xff]
    %v22 = vld [vmem:[%s0 + $0x20] sm:$0xff]
    %v23 = vld [vmem:[%s0 + $0x28] sm:$0xff]
    %v24 = vld [vmem:[%s0 + $0x30] sm:$0xff]
    %v25 = vld [vmem:[%s0 + $0x38] sm:$0xff]
    %v26 = vld [vmem:[%s0 + $0x40] sm:$0xff]
    %v27 = vld [vmem:[%s0 + $0x48] sm:$0xff]
    %v28 = vld [vmem:[%s0 + $0x50] sm:$0xff]
    %v29 = vld [vmem:[%s0 + $0x58] sm:$0xff]
    %v30 = vld [vmem:[%s0 + $0x60] sm:$0xff]
    %v31 = vld [vmem:[%s0 + $0x68] sm:$0xff]
    %v32 = vld [vmem:[%s0 + $0x70] sm:$0xff]
    %v33 = vld [vmem:[%s0 + $0x78] sm:$0xff]
    %v34 = vld [vmem:[%s1] sm:$0xff]
    %v35 = vld [vmem:[%s1 + $0x8] sm:$0xff]
    %v36 = vld [vmem:[%s1 + $0x10] sm:$0xff]
    %v37 = vld [vmem:[%s1 + $0x18] sm:$0xff]
    %vm38 = vcmask 261120
    %v40 = vsel %vm38, %v18, 0
    %v43 = vsel %vm38, %v19, 0
    %v46 = vsel %vm38, %v20, 0
    %v49 = vsel %vm38, %v21, 0
    %v52 = vsel %vm38, %v22, 0
    %v55 = vsel %vm38, %v23, 0
    %v58 = vsel %vm38, %v24, 0
    %v61 = vsel %vm38, %v25, 0
    %v64 = vsel %vm38, %v26, 0
    %v67 = vsel %vm38, %v27, 0
    %v70 = vsel %vm38, %v28, 0
    %v73 = vsel %vm38, %v29, 0
    %v76 = vsel %vm38, %v30, 0
    %v79 = vsel %vm38, %v31, 0
    %v82 = vsel %vm38, %v32, 0
    %v85 = vsel %vm38, %v33, 0
    %87 = vmatpush.msra.mxu0 0.0
    %88 = vmatpush.msra.mxu0 0.0
    %89 = vmatpush.msra.mxu0 0.0
    %90 = vmatpush.msra.mxu0 0.0
    %91 = vmatpush.msra.mxu0 0.0
    %92 = vmatpush.msra.mxu0 0.0
    %93 = vmatpush.msra.mxu0 0.0
    %94 = vmatpush.msra.mxu0 0.0
    %95 = vmatpush.msra.mxu0 0.0
    %96 = vmatpush.msra.mxu0 0.0
    %97 = vmatpush.msra.mxu0 0.0
    %98 = vmatpush.msra.mxu0 0.0
    %99 = vmatpush.msra.mxu0 %v37
    %100 = vmatpush.msra.mxu0 %v36
    %101 = vmatpush.msra.mxu0 %v35
    %102 = vmatpush.msra.mxu0 %v34
    %103 = vmatmul.f32.gmra.mxu0 %v40
    %v104 = vpop.f32.mrf.mxu0
    %v105 = vadd.f32 0.0, %v104
    %106 = vmatmul.f32.gmra.mxu0 %v43
    %v107 = vpop.f32.mrf.mxu0
    %v108 = vadd.f32 0.0, %v107
    %109 = vmatmul.f32.gmra.mxu0 %v46
    %v110 = vpop.f32.mrf.mxu0
    %v111 = vadd.f32 0.0, %v110
    %112 = vmatmul.f32.gmra.mxu0 %v49
    %v113 = vpop.f32.mrf.mxu0
    %v114 = vadd.f32 0.0, %v113
    %115 = vmatmul.f32.gmra.mxu0 %v52
    %v116 = vpop.f32.mrf.mxu0
    %v117 = vadd.f32 0.0, %v116
    %118 = vmatmul.f32.gmra.mxu0 %v55
    %v119 = vpop.f32.mrf.mxu0
    %v120 = vadd.f32 0.0, %v119
    %121 = vmatmul.f32.gmra.mxu0 %v58
    %v122 = vpop.f32.mrf.mxu0
    %v123 = vadd.f32 0.0, %v122
    %124 = vmatmul.f32.gmra.mxu0 %v61
    %v125 = vpop.f32.mrf.mxu0
    %v126 = vadd.f32 0.0, %v125
    %127 = vmatmul.f32.gmra.mxu0 %v64
    %v128 = vpop.f32.mrf.mxu0
    %v129 = vadd.f32 0.0, %v128
    %130 = vmatmul.f32.gmra.mxu0 %v67
    %v131 = vpop.f32.mrf.mxu0
    %v132 = vadd.f32 0.0, %v131
    %133 = vmatmul.f32.gmra.mxu0 %v70
    %v134 = vpop.f32.mrf.mxu0
    %v135 = vadd.f32 0.0, %v134
    %136 = vmatmul.f32.gmra.mxu0 %v73
    %v137 = vpop.f32.mrf.mxu0
    %v138 = vadd.f32 0.0, %v137
    %139 = vmatmul.f32.gmra.mxu0 %v76
    %v140 = vpop.f32.mrf.mxu0
    %v141 = vadd.f32 0.0, %v140
    %142 = vmatmul.f32.gmra.mxu0 %v79
    %v143 = vpop.f32.mrf.mxu0
    %v144 = vadd.f32 0.0, %v143
    %145 = vmatmul.f32.gmra.mxu0 %v82
    %v146 = vpop.f32.mrf.mxu0
    %v147 = vadd.f32 0.0, %v146
    %148 = vmatmul.f32.gmra.mxu0 %v85
    %v149 = vpop.f32.mrf.mxu0
    %v150 = vadd.f32 0.0, %v149
    %151 = vdwg.mxu0
    %168 = vrot.lane.b32.xlu0 %v105, 112
    %v169 = vpop.permute.xlu0 %168
    %170 = vrot.lane.b32.xlu0 %v108, 112
    %v171 = vpop.permute.xlu0 %170
    %172 = vrot.lane.b32.xlu0 %v111, 112
    %v173 = vpop.permute.xlu0 %172
    %174 = vrot.lane.b32.xlu0 %v114, 112
    %v175 = vpop.permute.xlu0 %174
    %176 = vrot.lane.b32.xlu0 %v117, 112
    %v177 = vpop.permute.xlu0 %176
    %178 = vrot.lane.b32.xlu0 %v120, 112
    %v179 = vpop.permute.xlu0 %178
    %180 = vrot.lane.b32.xlu0 %v123, 112
    %v181 = vpop.permute.xlu0 %180
    %182 = vrot.lane.b32.xlu0 %v126, 112
    %v183 = vpop.permute.xlu0 %182
    %184 = vrot.lane.b32.xlu0 %v129, 112
    %v185 = vpop.permute.xlu0 %184
    %186 = vrot.lane.b32.xlu0 %v132, 112
    %v187 = vpop.permute.xlu0 %186
    %188 = vrot.lane.b32.xlu0 %v135, 112
    %v189 = vpop.permute.xlu0 %188
    %190 = vrot.lane.b32.xlu0 %v138, 112
    %v191 = vpop.permute.xlu0 %190
    %192 = vrot.lane.b32.xlu0 %v141, 112
    %v193 = vpop.permute.xlu0 %192
    %194 = vrot.lane.b32.xlu0 %v144, 112
    %v195 = vpop.permute.xlu0 %194
    %196 = vrot.lane.b32.xlu0 %v147, 112
    %v197 = vpop.permute.xlu0 %196
    %198 = vrot.lane.b32.xlu0 %v150, 112
    %v199 = vpop.permute.xlu0 %198
    %200 = vrot.lane.b32.xlu0 %v105, 96
    %v201 = vpop.permute.xlu0 %200
    %vm202 = vcmask 130048
    %v203 = vsel %vm202, %v105, 0
    %v205 = vsel %vm202, %v201, 0
    %207 = vmatpush.xpose.msra.mxu0 0.0
    %208 = vmatpush.xpose.msra.mxu0 0.0
    %209 = vmatpush.xpose.msra.mxu0 0.0
    %210 = vmatpush.xpose.msra.mxu0 0.0
    %211 = vmatpush.xpose.msra.mxu0 0.0
    %212 = vmatpush.xpose.msra.mxu0 0.0
    %213 = vmatpush.xpose.msra.mxu0 0.0
    %214 = vmatpush.xpose.msra.mxu0 0.0
    %215 = vmatpush.xpose.msra.mxu0 0.0
    %216 = vmatpush.xpose.msra.mxu0 0.0
    %217 = vmatpush.xpose.msra.mxu0 0.0
    %218 = vmatpush.xpose.msra.mxu0 0.0
    %219 = vmatpush.xpose.msra.mxu0 0.0
    %220 = vmatpush.xpose.msra.mxu0 0.0
    %221 = vmatpush.xpose.msra.mxu0 0.0
    %222 = vmatpush.xpose.msra.mxu0 %v205
    %223 = vmatmul.f32.gmra.mxu0 %v203
    %v224 = vpop.f32.mrf.mxu0
    %v225 = vadd.f32 0.0, %v224
    %226 = vdwg.mxu0
    %227 = vrot.lane.b32.xlu0 %v108, 96
    %v228 = vpop.permute.xlu0 %227
    %v229 = vsel %vm202, %v108, 0
    %v231 = vsel %vm202, %v228, 0
    %233 = vmatpush.xpose.msra.mxu0 0.0
    %234 = vmatpush.xpose.msra.mxu0 0.0
    %235 = vmatpush.xpose.msra.mxu0 0.0
    %236 = vmatpush.xpose.msra.mxu0 0.0
    %237 = vmatpush.xpose.msra.mxu0 0.0
    %238 = vmatpush.xpose.msra.mxu0 0.0
    %239 = vmatpush.xpose.msra.mxu0 0.0
    %240 = vmatpush.xpose.msra.mxu0 0.0
    %241 = vmatpush.xpose.msra.mxu0 0.0
    %242 = vmatpush.xpose.msra.mxu0 0.0
    %243 = vmatpush.xpose.msra.mxu0 0.0
    %244 = vmatpush.xpose.msra.mxu0 0.0
    %245 = vmatpush.xpose.msra.mxu0 0.0
    %246 = vmatpush.xpose.msra.mxu0 0.0
    %247 = vmatpush.xpose.msra.mxu0 0.0
    %248 = vmatpush.xpose.msra.mxu0 %v231
    %249 = vmatmul.f32.gmra.mxu0 %v229
    %v250 = vpop.f32.mrf.mxu0
    %v251 = vadd.f32 0.0, %v250
    %252 = vdwg.mxu0
    %253 = vrot.lane.b32.xlu0 %v111, 96
    %v254 = vpop.permute.xlu0 %253
    %v255 = vsel %vm202, %v111, 0
    %v257 = vsel %vm202, %v254, 0
    %259 = vmatpush.xpose.msra.mxu0 0.0
    %260 = vmatpush.xpose.msra.mxu0 0.0
    %261 = vmatpush.xpose.msra.mxu0 0.0
    %262 = vmatpush.xpose.msra.mxu0 0.0
    %263 = vmatpush.xpose.msra.mxu0 0.0
    %264 = vmatpush.xpose.msra.mxu0 0.0
    %265 = vmatpush.xpose.msra.mxu0 0.0
    %266 = vmatpush.xpose.msra.mxu0 0.0
    %267 = vmatpush.xpose.msra.mxu0 0.0
    %268 = vmatpush.xpose.msra.mxu0 0.0
    %269 = vmatpush.xpose.msra.mxu0 0.0
    %270 = vmatpush.xpose.msra.mxu0 0.0
    %271 = vmatpush.xpose.msra.mxu0 0.0
    %272 = vmatpush.xpose.msra.mxu0 0.0
    %273 = vmatpush.xpose.msra.mxu0 0.0
    %274 = vmatpush.xpose.msra.mxu0 %v257
    %275 = vmatmul.f32.gmra.mxu0 %v255
    %v276 = vpop.f32.mrf.mxu0
    %v277 = vadd.f32 0.0, %v276
    %278 = vdwg.mxu0
    %279 = vrot.lane.b32.xlu0 %v114, 96
    %v280 = vpop.permute.xlu0 %279
    %v281 = vsel %vm202, %v114, 0
    %v283 = vsel %vm202, %v280, 0
    %285 = vmatpush.xpose.msra.mxu0 0.0
    %286 = vmatpush.xpose.msra.mxu0 0.0
    %287 = vmatpush.xpose.msra.mxu0 0.0
    %288 = vmatpush.xpose.msra.mxu0 0.0
    %289 = vmatpush.xpose.msra.mxu0 0.0
    %290 = vmatpush.xpose.msra.mxu0 0.0
    %291 = vmatpush.xpose.msra.mxu0 0.0
    %292 = vmatpush.xpose.msra.mxu0 0.0
    %293 = vmatpush.xpose.msra.mxu0 0.0
    %294 = vmatpush.xpose.msra.mxu0 0.0
    %295 = vmatpush.xpose.msra.mxu0 0.0
    %296 = vmatpush.xpose.msra.mxu0 0.0
    %297 = vmatpush.xpose.msra.mxu0 0.0
    %298 = vmatpush.xpose.msra.mxu0 0.0
    %299 = vmatpush.xpose.msra.mxu0 0.0
    %300 = vmatpush.xpose.msra.mxu0 %v283
    %301 = vmatmul.f32.gmra.mxu0 %v281
    %v302 = vpop.f32.mrf.mxu0
    %v303 = vadd.f32 0.0, %v302
    %304 = vdwg.mxu0
    %305 = vrot.lane.b32.xlu0 %v117, 96
    %v306 = vpop.permute.xlu0 %305
    %v307 = vsel %vm202, %v117, 0
    %v309 = vsel %vm202, %v306, 0
    %311 = vmatpush.xpose.msra.mxu0 0.0
    %312 = vmatpush.xpose.msra.mxu0 0.0
    %313 = vmatpush.xpose.msra.mxu0 0.0
    %314 = vmatpush.xpose.msra.mxu0 0.0
    %315 = vmatpush.xpose.msra.mxu0 0.0
    %316 = vmatpush.xpose.msra.mxu0 0.0
    %317 = vmatpush.xpose.msra.mxu0 0.0
    %318 = vmatpush.xpose.msra.mxu0 0.0
    %319 = vmatpush.xpose.msra.mxu0 0.0
    %320 = vmatpush.xpose.msra.mxu0 0.0
    %321 = vmatpush.xpose.msra.mxu0 0.0
    %322 = vmatpush.xpose.msra.mxu0 0.0
    %323 = vmatpush.xpose.msra.mxu0 0.0
    %324 = vmatpush.xpose.msra.mxu0 0.0
    %325 = vmatpush.xpose.msra.mxu0 0.0
    %326 = vmatpush.xpose.msra.mxu0 %v309
    %327 = vmatmul.f32.gmra.mxu0 %v307
    %v328 = vpop.f32.mrf.mxu0
    %v329 = vadd.f32 0.0, %v328
    %330 = vdwg.mxu0
    %331 = vrot.lane.b32.xlu0 %v120, 96
    %v332 = vpop.permute.xlu0 %331
    %v333 = vsel %vm202, %v120, 0
    %v335 = vsel %vm202, %v332, 0
    %337 = vmatpush.xpose.msra.mxu0 0.0
    %338 = vmatpush.xpose.msra.mxu0 0.0
    %339 = vmatpush.xpose.msra.mxu0 0.0
    %340 = vmatpush.xpose.msra.mxu0 0.0
    %341 = vmatpush.xpose.msra.mxu0 0.0
    %342 = vmatpush.xpose.msra.mxu0 0.0
    %343 = vmatpush.xpose.msra.mxu0 0.0
    %344 = vmatpush.xpose.msra.mxu0 0.0
    %345 = vmatpush.xpose.msra.mxu0 0.0
    %346 = vmatpush.xpose.msra.mxu0 0.0
    %347 = vmatpush.xpose.msra.mxu0 0.0
    %348 = vmatpush.xpose.msra.mxu0 0.0
    %349 = vmatpush.xpose.msra.mxu0 0.0
    %350 = vmatpush.xpose.msra.mxu0 0.0
    %351 = vmatpush.xpose.msra.mxu0 0.0
    %352 = vmatpush.xpose.msra.mxu0 %v335
    %353 = vmatmul.f32.gmra.mxu0 %v333
    %v354 = vpop.f32.mrf.mxu0
    %v355 = vadd.f32 0.0, %v354
    %356 = vdwg.mxu0
    %357 = vrot.lane.b32.xlu0 %v123, 96
    %v358 = vpop.permute.xlu0 %357
    %v359 = vsel %vm202, %v123, 0
    %v361 = vsel %vm202, %v358, 0
    %363 = vmatpush.xpose.msra.mxu0 0.0
    %364 = vmatpush.xpose.msra.mxu0 0.0
    %365 = vmatpush.xpose.msra.mxu0 0.0
    %366 = vmatpush.xpose.msra.mxu0 0.0
    %367 = vmatpush.xpose.msra.mxu0 0.0
    %368 = vmatpush.xpose.msra.mxu0 0.0
    %369 = vmatpush.xpose.msra.mxu0 0.0
    %370 = vmatpush.xpose.msra.mxu0 0.0
    %371 = vmatpush.xpose.msra.mxu0 0.0
    %372 = vmatpush.xpose.msra.mxu0 0.0
    %373 = vmatpush.xpose.msra.mxu0 0.0
    %374 = vmatpush.xpose.msra.mxu0 0.0
    %375 = vmatpush.xpose.msra.mxu0 0.0
    %376 = vmatpush.xpose.msra.mxu0 0.0
    %377 = vmatpush.xpose.msra.mxu0 0.0
    %378 = vmatpush.xpose.msra.mxu0 %v361
    %379 = vmatmul.f32.gmra.mxu0 %v359
    %v380 = vpop.f32.mrf.mxu0
    %v381 = vadd.f32 0.0, %v380
    %382 = vdwg.mxu0
    %383 = vrot.lane.b32.xlu0 %v126, 96
    %v384 = vpop.permute.xlu0 %383
    %v385 = vsel %vm202, %v126, 0
    %v387 = vsel %vm202, %v384, 0
    %389 = vmatpush.xpose.msra.mxu0 0.0
    %390 = vmatpush.xpose.msra.mxu0 0.0
    %391 = vmatpush.xpose.msra.mxu0 0.0
    %392 = vmatpush.xpose.msra.mxu0 0.0
    %393 = vmatpush.xpose.msra.mxu0 0.0
    %394 = vmatpush.xpose.msra.mxu0 0.0
    %395 = vmatpush.xpose.msra.mxu0 0.0
    %396 = vmatpush.xpose.msra.mxu0 0.0
    %397 = vmatpush.xpose.msra.mxu0 0.0
    %398 = vmatpush.xpose.msra.mxu0 0.0
    %399 = vmatpush.xpose.msra.mxu0 0.0
    %400 = vmatpush.xpose.msra.mxu0 0.0
    %401 = vmatpush.xpose.msra.mxu0 0.0
    %402 = vmatpush.xpose.msra.mxu0 0.0
    %403 = vmatpush.xpose.msra.mxu0 0.0
    %404 = vmatpush.xpose.msra.mxu0 %v387
    %405 = vmatmul.f32.gmra.mxu0 %v385
    %v406 = vpop.f32.mrf.mxu0
    %v407 = vadd.f32 0.0, %v406
    %408 = vdwg.mxu0
    %409 = vrot.lane.b32.xlu0 %v129, 96
    %v410 = vpop.permute.xlu0 %409
    %v411 = vsel %vm202, %v129, 0
    %v413 = vsel %vm202, %v410, 0
    %415 = vmatpush.xpose.msra.mxu0 0.0
    %416 = vmatpush.xpose.msra.mxu0 0.0
    %417 = vmatpush.xpose.msra.mxu0 0.0
    %418 = vmatpush.xpose.msra.mxu0 0.0
    %419 = vmatpush.xpose.msra.mxu0 0.0
    %420 = vmatpush.xpose.msra.mxu0 0.0
    %421 = vmatpush.xpose.msra.mxu0 0.0
    %422 = vmatpush.xpose.msra.mxu0 0.0
    %423 = vmatpush.xpose.msra.mxu0 0.0
    %424 = vmatpush.xpose.msra.mxu0 0.0
    %425 = vmatpush.xpose.msra.mxu0 0.0
    %426 = vmatpush.xpose.msra.mxu0 0.0
    %427 = vmatpush.xpose.msra.mxu0 0.0
    %428 = vmatpush.xpose.msra.mxu0 0.0
    %429 = vmatpush.xpose.msra.mxu0 0.0
    %430 = vmatpush.xpose.msra.mxu0 %v413
    %431 = vmatmul.f32.gmra.mxu0 %v411
    %v432 = vpop.f32.mrf.mxu0
    %v433 = vadd.f32 0.0, %v432
    %434 = vdwg.mxu0
    %435 = vrot.lane.b32.xlu0 %v132, 96
    %v436 = vpop.permute.xlu0 %435
    %v437 = vsel %vm202, %v132, 0
    %v439 = vsel %vm202, %v436, 0
    %441 = vmatpush.xpose.msra.mxu0 0.0
    %442 = vmatpush.xpose.msra.mxu0 0.0
    %443 = vmatpush.xpose.msra.mxu0 0.0
    %444 = vmatpush.xpose.msra.mxu0 0.0
    %445 = vmatpush.xpose.msra.mxu0 0.0
    %446 = vmatpush.xpose.msra.mxu0 0.0
    %447 = vmatpush.xpose.msra.mxu0 0.0
    %448 = vmatpush.xpose.msra.mxu0 0.0
    %449 = vmatpush.xpose.msra.mxu0 0.0
    %450 = vmatpush.xpose.msra.mxu0 0.0
    %451 = vmatpush.xpose.msra.mxu0 0.0
    %452 = vmatpush.xpose.msra.mxu0 0.0
    %453 = vmatpush.xpose.msra.mxu0 0.0
    %454 = vmatpush.xpose.msra.mxu0 0.0
    %455 = vmatpush.xpose.msra.mxu0 0.0
    %456 = vmatpush.xpose.msra.mxu0 %v439
    %457 = vmatmul.f32.gmra.mxu0 %v437
    %v458 = vpop.f32.mrf.mxu0
    %v459 = vadd.f32 0.0, %v458
    %460 = vdwg.mxu0
    %461 = vrot.lane.b32.xlu0 %v135, 96
    %v462 = vpop.permute.xlu0 %461
    %v463 = vsel %vm202, %v135, 0
    %v465 = vsel %vm202, %v462, 0
    %467 = vmatpush.xpose.msra.mxu0 0.0
    %468 = vmatpush.xpose.msra.mxu0 0.0
    %469 = vmatpush.xpose.msra.mxu0 0.0
    %470 = vmatpush.xpose.msra.mxu0 0.0
    %471 = vmatpush.xpose.msra.mxu0 0.0
    %472 = vmatpush.xpose.msra.mxu0 0.0
    %473 = vmatpush.xpose.msra.mxu0 0.0
    %474 = vmatpush.xpose.msra.mxu0 0.0
    %475 = vmatpush.xpose.msra.mxu0 0.0
    %476 = vmatpush.xpose.msra.mxu0 0.0
    %477 = vmatpush.xpose.msra.mxu0 0.0
    %478 = vmatpush.xpose.msra.mxu0 0.0
    %479 = vmatpush.xpose.msra.mxu0 0.0
    %480 = vmatpush.xpose.msra.mxu0 0.0
    %481 = vmatpush.xpose.msra.mxu0 0.0
    %482 = vmatpush.xpose.msra.mxu0 %v465
    %483 = vmatmul.f32.gmra.mxu0 %v463
    %v484 = vpop.f32.mrf.mxu0
    %v485 = vadd.f32 0.0, %v484
    %486 = vdwg.mxu0
    %487 = vrot.lane.b32.xlu0 %v138, 96
    %v488 = vpop.permute.xlu0 %487
    %v489 = vsel %vm202, %v138, 0
    %v491 = vsel %vm202, %v488, 0
    %493 = vmatpush.xpose.msra.mxu0 0.0
    %494 = vmatpush.xpose.msra.mxu0 0.0
    %495 = vmatpush.xpose.msra.mxu0 0.0
    %496 = vmatpush.xpose.msra.mxu0 0.0
    %497 = vmatpush.xpose.msra.mxu0 0.0
    %498 = vmatpush.xpose.msra.mxu0 0.0
    %499 = vmatpush.xpose.msra.mxu0 0.0
    %500 = vmatpush.xpose.msra.mxu0 0.0
    %501 = vmatpush.xpose.msra.mxu0 0.0
    %502 = vmatpush.xpose.msra.mxu0 0.0
    %503 = vmatpush.xpose.msra.mxu0 0.0
    %504 = vmatpush.xpose.msra.mxu0 0.0
    %505 = vmatpush.xpose.msra.mxu0 0.0
    %506 = vmatpush.xpose.msra.mxu0 0.0
    %507 = vmatpush.xpose.msra.mxu0 0.0
    %508 = vmatpush.xpose.msra.mxu0 %v491
    %509 = vmatmul.f32.gmra.mxu0 %v489
    %v510 = vpop.f32.mrf.mxu0
    %v511 = vadd.f32 0.0, %v510
    %512 = vdwg.mxu0
    %513 = vrot.lane.b32.xlu0 %v141, 96
    %v514 = vpop.permute.xlu0 %513
    %v515 = vsel %vm202, %v141, 0
    %v517 = vsel %vm202, %v514, 0
    %519 = vmatpush.xpose.msra.mxu0 0.0
    %520 = vmatpush.xpose.msra.mxu0 0.0
    %521 = vmatpush.xpose.msra.mxu0 0.0
    %522 = vmatpush.xpose.msra.mxu0 0.0
    %523 = vmatpush.xpose.msra.mxu0 0.0
    %524 = vmatpush.xpose.msra.mxu0 0.0
    %525 = vmatpush.xpose.msra.mxu0 0.0
    %526 = vmatpush.xpose.msra.mxu0 0.0
    %527 = vmatpush.xpose.msra.mxu0 0.0
    %528 = vmatpush.xpose.msra.mxu0 0.0
    %529 = vmatpush.xpose.msra.mxu0 0.0
    %530 = vmatpush.xpose.msra.mxu0 0.0
    %531 = vmatpush.xpose.msra.mxu0 0.0
    %532 = vmatpush.xpose.msra.mxu0 0.0
    %533 = vmatpush.xpose.msra.mxu0 0.0
    %534 = vmatpush.xpose.msra.mxu0 %v517
    %535 = vmatmul.f32.gmra.mxu0 %v515
    %v536 = vpop.f32.mrf.mxu0
    %v537 = vadd.f32 0.0, %v536
    %538 = vdwg.mxu0
    %539 = vrot.lane.b32.xlu0 %v144, 96
    %v540 = vpop.permute.xlu0 %539
    %v541 = vsel %vm202, %v144, 0
    %v543 = vsel %vm202, %v540, 0
    %545 = vmatpush.xpose.msra.mxu0 0.0
    %546 = vmatpush.xpose.msra.mxu0 0.0
    %547 = vmatpush.xpose.msra.mxu0 0.0
    %548 = vmatpush.xpose.msra.mxu0 0.0
    %549 = vmatpush.xpose.msra.mxu0 0.0
    %550 = vmatpush.xpose.msra.mxu0 0.0
    %551 = vmatpush.xpose.msra.mxu0 0.0
    %552 = vmatpush.xpose.msra.mxu0 0.0
    %553 = vmatpush.xpose.msra.mxu0 0.0
    %554 = vmatpush.xpose.msra.mxu0 0.0
    %555 = vmatpush.xpose.msra.mxu0 0.0
    %556 = vmatpush.xpose.msra.mxu0 0.0
    %557 = vmatpush.xpose.msra.mxu0 0.0
    %558 = vmatpush.xpose.msra.mxu0 0.0
    %559 = vmatpush.xpose.msra.mxu0 0.0
    %560 = vmatpush.xpose.msra.mxu0 %v543
    %561 = vmatmul.f32.gmra.mxu0 %v541
    %v562 = vpop.f32.mrf.mxu0
    %v563 = vadd.f32 0.0, %v562
    %564 = vdwg.mxu0
    %565 = vrot.lane.b32.xlu0 %v147, 96
    %v566 = vpop.permute.xlu0 %565
    %v567 = vsel %vm202, %v147, 0
    %v569 = vsel %vm202, %v566, 0
    %571 = vmatpush.xpose.msra.mxu0 0.0
    %572 = vmatpush.xpose.msra.mxu0 0.0
    %573 = vmatpush.xpose.msra.mxu0 0.0
    %574 = vmatpush.xpose.msra.mxu0 0.0
    %575 = vmatpush.xpose.msra.mxu0 0.0
    %576 = vmatpush.xpose.msra.mxu0 0.0
    %577 = vmatpush.xpose.msra.mxu0 0.0
    %578 = vmatpush.xpose.msra.mxu0 0.0
    %579 = vmatpush.xpose.msra.mxu0 0.0
    %580 = vmatpush.xpose.msra.mxu0 0.0
    %581 = vmatpush.xpose.msra.mxu0 0.0
    %582 = vmatpush.xpose.msra.mxu0 0.0
    %583 = vmatpush.xpose.msra.mxu0 0.0
    %584 = vmatpush.xpose.msra.mxu0 0.0
    %585 = vmatpush.xpose.msra.mxu0 0.0
    %586 = vmatpush.xpose.msra.mxu0 %v569
    %587 = vmatmul.f32.gmra.mxu0 %v567
    %v588 = vpop.f32.mrf.mxu0
    %v589 = vadd.f32 0.0, %v588
    %590 = vdwg.mxu0
    %591 = vrot.lane.b32.xlu0 %v150, 96
    %v592 = vpop.permute.xlu0 %591
    %v593 = vsel %vm202, %v150, 0
    %v595 = vsel %vm202, %v592, 0
    %597 = vmatpush.xpose.msra.mxu0 0.0
    %598 = vmatpush.xpose.msra.mxu0 0.0
    %599 = vmatpush.xpose.msra.mxu0 0.0
    %600 = vmatpush.xpose.msra.mxu0 0.0
    %601 = vmatpush.xpose.msra.mxu0 0.0
    %602 = vmatpush.xpose.msra.mxu0 0.0
    %603 = vmatpush.xpose.msra.mxu0 0.0
    %604 = vmatpush.xpose.msra.mxu0 0.0
    %605 = vmatpush.xpose.msra.mxu0 0.0
    %606 = vmatpush.xpose.msra.mxu0 0.0
    %607 = vmatpush.xpose.msra.mxu0 0.0
    %608 = vmatpush.xpose.msra.mxu0 0.0
    %609 = vmatpush.xpose.msra.mxu0 0.0
    %610 = vmatpush.xpose.msra.mxu0 0.0
    %611 = vmatpush.xpose.msra.mxu0 0.0
    %612 = vmatpush.xpose.msra.mxu0 %v595
    %613 = vmatmul.f32.gmra.mxu0 %v593
    %v614 = vpop.f32.mrf.mxu0
    %v615 = vadd.f32 0.0, %v614
    %616 = vdwg.mxu0
    %617 = vrot.lane.b32.xlu0 %v169, 96
    %v618 = vpop.permute.xlu0 %617
    %v619 = vsel %vm202, %v169, 0
    %v621 = vsel %vm202, %v618, 0
    %623 = vmatpush.xpose.msra.mxu0 0.0
    %624 = vmatpush.xpose.msra.mxu0 0.0
    %625 = vmatpush.xpose.msra.mxu0 0.0
    %626 = vmatpush.xpose.msra.mxu0 0.0
    %627 = vmatpush.xpose.msra.mxu0 0.0
    %628 = vmatpush.xpose.msra.mxu0 0.0
    %629 = vmatpush.xpose.msra.mxu0 0.0
    %630 = vmatpush.xpose.msra.mxu0 0.0
    %631 = vmatpush.xpose.msra.mxu0 0.0
    %632 = vmatpush.xpose.msra.mxu0 0.0
    %633 = vmatpush.xpose.msra.mxu0 0.0
    %634 = vmatpush.xpose.msra.mxu0 0.0
    %635 = vmatpush.xpose.msra.mxu0 0.0
    %636 = vmatpush.xpose.msra.mxu0 0.0
    %637 = vmatpush.xpose.msra.mxu0 0.0
    %638 = vmatpush.xpose.msra.mxu0 %v621
    %639 = vmatmul.f32.gmra.mxu0 %v619
    %v640 = vpop.f32.mrf.mxu0
    %v641 = vadd.f32 0.0, %v640
    %642 = vdwg.mxu0
    %643 = vrot.lane.b32.xlu0 %v171, 96
    %v644 = vpop.permute.xlu0 %643
    %v645 = vsel %vm202, %v171, 0
    %v647 = vsel %vm202, %v644, 0
    %649 = vmatpush.xpose.msra.mxu0 0.0
    %650 = vmatpush.xpose.msra.mxu0 0.0
    %651 = vmatpush.xpose.msra.mxu0 0.0
    %652 = vmatpush.xpose.msra.mxu0 0.0
    %653 = vmatpush.xpose.msra.mxu0 0.0
    %654 = vmatpush.xpose.msra.mxu0 0.0
    %655 = vmatpush.xpose.msra.mxu0 0.0
    %656 = vmatpush.xpose.msra.mxu0 0.0
    %657 = vmatpush.xpose.msra.mxu0 0.0
    %658 = vmatpush.xpose.msra.mxu0 0.0
    %659 = vmatpush.xpose.msra.mxu0 0.0
    %660 = vmatpush.xpose.msra.mxu0 0.0
    %661 = vmatpush.xpose.msra.mxu0 0.0
    %662 = vmatpush.xpose.msra.mxu0 0.0
    %663 = vmatpush.xpose.msra.mxu0 0.0
    %664 = vmatpush.xpose.msra.mxu0 %v647
    %665 = vmatmul.f32.gmra.mxu0 %v645
    %v666 = vpop.f32.mrf.mxu0
    %v667 = vadd.f32 0.0, %v666
    %668 = vdwg.mxu0
    %669 = vrot.lane.b32.xlu0 %v173, 96
    %v670 = vpop.permute.xlu0 %669
    %v671 = vsel %vm202, %v173, 0
    %v673 = vsel %vm202, %v670, 0
    %675 = vmatpush.xpose.msra.mxu0 0.0
    %676 = vmatpush.xpose.msra.mxu0 0.0
    %677 = vmatpush.xpose.msra.mxu0 0.0
    %678 = vmatpush.xpose.msra.mxu0 0.0
    %679 = vmatpush.xpose.msra.mxu0 0.0
    %680 = vmatpush.xpose.msra.mxu0 0.0
    %681 = vmatpush.xpose.msra.mxu0 0.0
    %682 = vmatpush.xpose.msra.mxu0 0.0
    %683 = vmatpush.xpose.msra.mxu0 0.0
    %684 = vmatpush.xpose.msra.mxu0 0.0
    %685 = vmatpush.xpose.msra.mxu0 0.0
    %686 = vmatpush.xpose.msra.mxu0 0.0
    %687 = vmatpush.xpose.msra.mxu0 0.0
    %688 = vmatpush.xpose.msra.mxu0 0.0
    %689 = vmatpush.xpose.msra.mxu0 0.0
    %690 = vmatpush.xpose.msra.mxu0 %v673
    %691 = vmatmul.f32.gmra.mxu0 %v671
    %v692 = vpop.f32.mrf.mxu0
    %v693 = vadd.f32 0.0, %v692
    %694 = vdwg.mxu0
    %695 = vrot.lane.b32.xlu0 %v175, 96
    %v696 = vpop.permute.xlu0 %695
    %v697 = vsel %vm202, %v175, 0
    %v699 = vsel %vm202, %v696, 0
    %701 = vmatpush.xpose.msra.mxu0 0.0
    %702 = vmatpush.xpose.msra.mxu0 0.0
    %703 = vmatpush.xpose.msra.mxu0 0.0
    %704 = vmatpush.xpose.msra.mxu0 0.0
    %705 = vmatpush.xpose.msra.mxu0 0.0
    %706 = vmatpush.xpose.msra.mxu0 0.0
    %707 = vmatpush.xpose.msra.mxu0 0.0
    %708 = vmatpush.xpose.msra.mxu0 0.0
    %709 = vmatpush.xpose.msra.mxu0 0.0
    %710 = vmatpush.xpose.msra.mxu0 0.0
    %711 = vmatpush.xpose.msra.mxu0 0.0
    %712 = vmatpush.xpose.msra.mxu0 0.0
    %713 = vmatpush.xpose.msra.mxu0 0.0
    %714 = vmatpush.xpose.msra.mxu0 0.0
    %715 = vmatpush.xpose.msra.mxu0 0.0
    %716 = vmatpush.xpose.msra.mxu0 %v699
    %717 = vmatmul.f32.gmra.mxu0 %v697
    %v718 = vpop.f32.mrf.mxu0
    %v719 = vadd.f32 0.0, %v718
    %720 = vdwg.mxu0
    %721 = vrot.lane.b32.xlu0 %v177, 96
    %v722 = vpop.permute.xlu0 %721
    %v723 = vsel %vm202, %v177, 0
    %v725 = vsel %vm202, %v722, 0
    %727 = vmatpush.xpose.msra.mxu0 0.0
    %728 = vmatpush.xpose.msra.mxu0 0.0
    %729 = vmatpush.xpose.msra.mxu0 0.0
    %730 = vmatpush.xpose.msra.mxu0 0.0
    %731 = vmatpush.xpose.msra.mxu0 0.0
    %732 = vmatpush.xpose.msra.mxu0 0.0
    %733 = vmatpush.xpose.msra.mxu0 0.0
    %734 = vmatpush.xpose.msra.mxu0 0.0
    %735 = vmatpush.xpose.msra.mxu0 0.0
    %736 = vmatpush.xpose.msra.mxu0 0.0
    %737 = vmatpush.xpose.msra.mxu0 0.0
    %738 = vmatpush.xpose.msra.mxu0 0.0
    %739 = vmatpush.xpose.msra.mxu0 0.0
    %740 = vmatpush.xpose.msra.mxu0 0.0
    %741 = vmatpush.xpose.msra.mxu0 0.0
    %742 = vmatpush.xpose.msra.mxu0 %v725
    %743 = vmatmul.f32.gmra.mxu0 %v723
    %v744 = vpop.f32.mrf.mxu0
    %v745 = vadd.f32 0.0, %v744
    %746 = vdwg.mxu0
    %747 = vrot.lane.b32.xlu0 %v179, 96
    %v748 = vpop.permute.xlu0 %747
    %v749 = vsel %vm202, %v179, 0
    %v751 = vsel %vm202, %v748, 0
    %753 = vmatpush.xpose.msra.mxu0 0.0
    %754 = vmatpush.xpose.msra.mxu0 0.0
    %755 = vmatpush.xpose.msra.mxu0 0.0
    %756 = vmatpush.xpose.msra.mxu0 0.0
    %757 = vmatpush.xpose.msra.mxu0 0.0
    %758 = vmatpush.xpose.msra.mxu0 0.0
    %759 = vmatpush.xpose.msra.mxu0 0.0
    %760 = vmatpush.xpose.msra.mxu0 0.0
    %761 = vmatpush.xpose.msra.mxu0 0.0
    %762 = vmatpush.xpose.msra.mxu0 0.0
    %763 = vmatpush.xpose.msra.mxu0 0.0
    %764 = vmatpush.xpose.msra.mxu0 0.0
    %765 = vmatpush.xpose.msra.mxu0 0.0
    %766 = vmatpush.xpose.msra.mxu0 0.0
    %767 = vmatpush.xpose.msra.mxu0 0.0
    %768 = vmatpush.xpose.msra.mxu0 %v751
    %769 = vmatmul.f32.gmra.mxu0 %v749
    %v770 = vpop.f32.mrf.mxu0
    %v771 = vadd.f32 0.0, %v770
    %772 = vdwg.mxu0
    %773 = vrot.lane.b32.xlu0 %v181, 96
    %v774 = vpop.permute.xlu0 %773
    %v775 = vsel %vm202, %v181, 0
    %v777 = vsel %vm202, %v774, 0
    %779 = vmatpush.xpose.msra.mxu0 0.0
    %780 = vmatpush.xpose.msra.mxu0 0.0
    %781 = vmatpush.xpose.msra.mxu0 0.0
    %782 = vmatpush.xpose.msra.mxu0 0.0
    %783 = vmatpush.xpose.msra.mxu0 0.0
    %784 = vmatpush.xpose.msra.mxu0 0.0
    %785 = vmatpush.xpose.msra.mxu0 0.0
    %786 = vmatpush.xpose.msra.mxu0 0.0
    %787 = vmatpush.xpose.msra.mxu0 0.0
    %788 = vmatpush.xpose.msra.mxu0 0.0
    %789 = vmatpush.xpose.msra.mxu0 0.0
    %790 = vmatpush.xpose.msra.mxu0 0.0
    %791 = vmatpush.xpose.msra.mxu0 0.0
    %792 = vmatpush.xpose.msra.mxu0 0.0
    %793 = vmatpush.xpose.msra.mxu0 0.0
    %794 = vmatpush.xpose.msra.mxu0 %v777
    %795 = vmatmul.f32.gmra.mxu0 %v775
    %v796 = vpop.f32.mrf.mxu0
    %v797 = vadd.f32 0.0, %v796
    %798 = vdwg.mxu0
    %799 = vrot.lane.b32.xlu0 %v183, 96
    %v800 = vpop.permute.xlu0 %799
    %v801 = vsel %vm202, %v183, 0
    %v803 = vsel %vm202, %v800, 0
    %805 = vmatpush.xpose.msra.mxu0 0.0
    %806 = vmatpush.xpose.msra.mxu0 0.0
    %807 = vmatpush.xpose.msra.mxu0 0.0
    %808 = vmatpush.xpose.msra.mxu0 0.0
    %809 = vmatpush.xpose.msra.mxu0 0.0
    %810 = vmatpush.xpose.msra.mxu0 0.0
    %811 = vmatpush.xpose.msra.mxu0 0.0
    %812 = vmatpush.xpose.msra.mxu0 0.0
    %813 = vmatpush.xpose.msra.mxu0 0.0
    %814 = vmatpush.xpose.msra.mxu0 0.0
    %815 = vmatpush.xpose.msra.mxu0 0.0
    %816 = vmatpush.xpose.msra.mxu0 0.0
    %817 = vmatpush.xpose.msra.mxu0 0.0
    %818 = vmatpush.xpose.msra.mxu0 0.0
    %819 = vmatpush.xpose.msra.mxu0 0.0
    %820 = vmatpush.xpose.msra.mxu0 %v803
    %821 = vmatmul.f32.gmra.mxu0 %v801
    %v822 = vpop.f32.mrf.mxu0
    %v823 = vadd.f32 0.0, %v822
    %824 = vdwg.mxu0
    %825 = vrot.lane.b32.xlu0 %v185, 96
    %v826 = vpop.permute.xlu0 %825
    %v827 = vsel %vm202, %v185, 0
    %v829 = vsel %vm202, %v826, 0
    %831 = vmatpush.xpose.msra.mxu0 0.0
    %832 = vmatpush.xpose.msra.mxu0 0.0
    %833 = vmatpush.xpose.msra.mxu0 0.0
    %834 = vmatpush.xpose.msra.mxu0 0.0
    %835 = vmatpush.xpose.msra.mxu0 0.0
    %836 = vmatpush.xpose.msra.mxu0 0.0
    %837 = vmatpush.xpose.msra.mxu0 0.0
    %838 = vmatpush.xpose.msra.mxu0 0.0
    %839 = vmatpush.xpose.msra.mxu0 0.0
    %840 = vmatpush.xpose.msra.mxu0 0.0
    %841 = vmatpush.xpose.msra.mxu0 0.0
    %842 = vmatpush.xpose.msra.mxu0 0.0
    %843 = vmatpush.xpose.msra.mxu0 0.0
    %844 = vmatpush.xpose.msra.mxu0 0.0
    %845 = vmatpush.xpose.msra.mxu0 0.0
    %846 = vmatpush.xpose.msra.mxu0 %v829
    %847 = vmatmul.f32.gmra.mxu0 %v827
    %v848 = vpop.f32.mrf.mxu0
    %v849 = vadd.f32 0.0, %v848
    %850 = vdwg.mxu0
    %851 = vrot.lane.b32.xlu0 %v187, 96
    %v852 = vpop.permute.xlu0 %851
    %v853 = vsel %vm202, %v187, 0
    %v855 = vsel %vm202, %v852, 0
    %857 = vmatpush.xpose.msra.mxu0 0.0
    %858 = vmatpush.xpose.msra.mxu0 0.0
    %859 = vmatpush.xpose.msra.mxu0 0.0
    %860 = vmatpush.xpose.msra.mxu0 0.0
    %861 = vmatpush.xpose.msra.mxu0 0.0
    %862 = vmatpush.xpose.msra.mxu0 0.0
    %863 = vmatpush.xpose.msra.mxu0 0.0
    %864 = vmatpush.xpose.msra.mxu0 0.0
    %865 = vmatpush.xpose.msra.mxu0 0.0
    %866 = vmatpush.xpose.msra.mxu0 0.0
    %867 = vmatpush.xpose.msra.mxu0 0.0
    %868 = vmatpush.xpose.msra.mxu0 0.0
    %869 = vmatpush.xpose.msra.mxu0 0.0
    %870 = vmatpush.xpose.msra.mxu0 0.0
    %871 = vmatpush.xpose.msra.mxu0 0.0
    %872 = vmatpush.xpose.msra.mxu0 %v855
    %873 = vmatmul.f32.gmra.mxu0 %v853
    %v874 = vpop.f32.mrf.mxu0
    %v875 = vadd.f32 0.0, %v874
    %876 = vdwg.mxu0
    %877 = vrot.lane.b32.xlu0 %v189, 96
    %v878 = vpop.permute.xlu0 %877
    %v879 = vsel %vm202, %v189, 0
    %v881 = vsel %vm202, %v878, 0
    %883 = vmatpush.xpose.msra.mxu0 0.0
    %884 = vmatpush.xpose.msra.mxu0 0.0
    %885 = vmatpush.xpose.msra.mxu0 0.0
    %886 = vmatpush.xpose.msra.mxu0 0.0
    %887 = vmatpush.xpose.msra.mxu0 0.0
    %888 = vmatpush.xpose.msra.mxu0 0.0
    %889 = vmatpush.xpose.msra.mxu0 0.0
    %890 = vmatpush.xpose.msra.mxu0 0.0
    %891 = vmatpush.xpose.msra.mxu0 0.0
    %892 = vmatpush.xpose.msra.mxu0 0.0
    %893 = vmatpush.xpose.msra.mxu0 0.0
    %894 = vmatpush.xpose.msra.mxu0 0.0
    %895 = vmatpush.xpose.msra.mxu0 0.0
    %896 = vmatpush.xpose.msra.mxu0 0.0
    %897 = vmatpush.xpose.msra.mxu0 0.0
    %898 = vmatpush.xpose.msra.mxu0 %v881
    %899 = vmatmul.f32.gmra.mxu0 %v879
    %v900 = vpop.f32.mrf.mxu0
    %v901 = vadd.f32 0.0, %v900
    %902 = vdwg.mxu0
    %903 = vrot.lane.b32.xlu0 %v191, 96
    %v904 = vpop.permute.xlu0 %903
    %v905 = vsel %vm202, %v191, 0
    %v907 = vsel %vm202, %v904, 0
    %909 = vmatpush.xpose.msra.mxu0 0.0
    %910 = vmatpush.xpose.msra.mxu0 0.0
    %911 = vmatpush.xpose.msra.mxu0 0.0
    %912 = vmatpush.xpose.msra.mxu0 0.0
    %913 = vmatpush.xpose.msra.mxu0 0.0
    %914 = vmatpush.xpose.msra.mxu0 0.0
    %915 = vmatpush.xpose.msra.mxu0 0.0
    %916 = vmatpush.xpose.msra.mxu0 0.0
    %917 = vmatpush.xpose.msra.mxu0 0.0
    %918 = vmatpush.xpose.msra.mxu0 0.0
    %919 = vmatpush.xpose.msra.mxu0 0.0
    %920 = vmatpush.xpose.msra.mxu0 0.0
    %921 = vmatpush.xpose.msra.mxu0 0.0
    %922 = vmatpush.xpose.msra.mxu0 0.0
    %923 = vmatpush.xpose.msra.mxu0 0.0
    %924 = vmatpush.xpose.msra.mxu0 %v907
    %925 = vmatmul.f32.gmra.mxu0 %v905
    %v926 = vpop.f32.mrf.mxu0
    %v927 = vadd.f32 0.0, %v926
    %928 = vdwg.mxu0
    %929 = vrot.lane.b32.xlu0 %v193, 96
    %v930 = vpop.permute.xlu0 %929
    %v931 = vsel %vm202, %v193, 0
    %v933 = vsel %vm202, %v930, 0
    %935 = vmatpush.xpose.msra.mxu0 0.0
    %936 = vmatpush.xpose.msra.mxu0 0.0
    %937 = vmatpush.xpose.msra.mxu0 0.0
    %938 = vmatpush.xpose.msra.mxu0 0.0
    %939 = vmatpush.xpose.msra.mxu0 0.0
    %940 = vmatpush.xpose.msra.mxu0 0.0
    %941 = vmatpush.xpose.msra.mxu0 0.0
    %942 = vmatpush.xpose.msra.mxu0 0.0
    %943 = vmatpush.xpose.msra.mxu0 0.0
    %944 = vmatpush.xpose.msra.mxu0 0.0
    %945 = vmatpush.xpose.msra.mxu0 0.0
    %946 = vmatpush.xpose.msra.mxu0 0.0
    %947 = vmatpush.xpose.msra.mxu0 0.0
    %948 = vmatpush.xpose.msra.mxu0 0.0
    %949 = vmatpush.xpose.msra.mxu0 0.0
    %950 = vmatpush.xpose.msra.mxu0 %v933
    %951 = vmatmul.f32.gmra.mxu0 %v931
    %v952 = vpop.f32.mrf.mxu0
    %v953 = vadd.f32 0.0, %v952
    %954 = vdwg.mxu0
    %955 = vrot.lane.b32.xlu0 %v195, 96
    %v956 = vpop.permute.xlu0 %955
    %v957 = vsel %vm202, %v195, 0
    %v959 = vsel %vm202, %v956, 0
    %961 = vmatpush.xpose.msra.mxu0 0.0
    %962 = vmatpush.xpose.msra.mxu0 0.0
    %963 = vmatpush.xpose.msra.mxu0 0.0
    %964 = vmatpush.xpose.msra.mxu0 0.0
    %965 = vmatpush.xpose.msra.mxu0 0.0
    %966 = vmatpush.xpose.msra.mxu0 0.0
    %967 = vmatpush.xpose.msra.mxu0 0.0
    %968 = vmatpush.xpose.msra.mxu0 0.0
    %969 = vmatpush.xpose.msra.mxu0 0.0
    %970 = vmatpush.xpose.msra.mxu0 0.0
    %971 = vmatpush.xpose.msra.mxu0 0.0
    %972 = vmatpush.xpose.msra.mxu0 0.0
    %973 = vmatpush.xpose.msra.mxu0 0.0
    %974 = vmatpush.xpose.msra.mxu0 0.0
    %975 = vmatpush.xpose.msra.mxu0 0.0
    %976 = vmatpush.xpose.msra.mxu0 %v959
    %977 = vmatmul.f32.gmra.mxu0 %v957
    %v978 = vpop.f32.mrf.mxu0
    %v979 = vadd.f32 0.0, %v978
    %980 = vdwg.mxu0
    %981 = vrot.lane.b32.xlu0 %v197, 96
    %v982 = vpop.permute.xlu0 %981
    %v983 = vsel %vm202, %v197, 0
    %v985 = vsel %vm202, %v982, 0
    %987 = vmatpush.xpose.msra.mxu0 0.0
    %988 = vmatpush.xpose.msra.mxu0 0.0
    %989 = vmatpush.xpose.msra.mxu0 0.0
    %990 = vmatpush.xpose.msra.mxu0 0.0
    %991 = vmatpush.xpose.msra.mxu0 0.0
    %992 = vmatpush.xpose.msra.mxu0 0.0
    %993 = vmatpush.xpose.msra.mxu0 0.0
    %994 = vmatpush.xpose.msra.mxu0 0.0
    %995 = vmatpush.xpose.msra.mxu0 0.0
    %996 = vmatpush.xpose.msra.mxu0 0.0
    %997 = vmatpush.xpose.msra.mxu0 0.0
    %998 = vmatpush.xpose.msra.mxu0 0.0
    %999 = vmatpush.xpose.msra.mxu0 0.0
    %1000 = vmatpush.xpose.msra.mxu0 0.0
    %1001 = vmatpush.xpose.msra.mxu0 0.0
    %1002 = vmatpush.xpose.msra.mxu0 %v985
    %1003 = vmatmul.f32.gmra.mxu0 %v983
    %v1004 = vpop.f32.mrf.mxu0
    %v1005 = vadd.f32 0.0, %v1004
    %1006 = vdwg.mxu0
    %1007 = vrot.lane.b32.xlu0 %v199, 96
    %v1008 = vpop.permute.xlu0 %1007
    %v1009 = vsel %vm202, %v199, 0
    %v1011 = vsel %vm202, %v1008, 0
    %1013 = vmatpush.xpose.msra.mxu0 0.0
    %1014 = vmatpush.xpose.msra.mxu0 0.0
    %1015 = vmatpush.xpose.msra.mxu0 0.0
    %1016 = vmatpush.xpose.msra.mxu0 0.0
    %1017 = vmatpush.xpose.msra.mxu0 0.0
    %1018 = vmatpush.xpose.msra.mxu0 0.0
    %1019 = vmatpush.xpose.msra.mxu0 0.0
    %1020 = vmatpush.xpose.msra.mxu0 0.0
    %1021 = vmatpush.xpose.msra.mxu0 0.0
    %1022 = vmatpush.xpose.msra.mxu0 0.0
    %1023 = vmatpush.xpose.msra.mxu0 0.0
    %1024 = vmatpush.xpose.msra.mxu0 0.0
    %1025 = vmatpush.xpose.msra.mxu0 0.0
    %1026 = vmatpush.xpose.msra.mxu0 0.0
    %1027 = vmatpush.xpose.msra.mxu0 0.0
    %1028 = vmatpush.xpose.msra.mxu0 %v1011
    %1029 = vmatmul.f32.gmra.mxu0 %v1009
    %v1030 = vpop.f32.mrf.mxu0
    %v1031 = vadd.f32 0.0, %v1030
    %1032 = vdwg.mxu0
    %v1033 = vld [vmem:[%s2] sm:$0xff]
    %v1034 = vld [vmem:[%s2 + $0x8] sm:$0xff]
    %v1035 = vadd.f32 %v225, %v1033
    %v1036 = vadd.f32 %v251, %v1033
    %v1037 = vadd.f32 %v277, %v1033
    %v1038 = vadd.f32 %v303, %v1033
    %v1039 = vadd.f32 %v329, %v1033
    %v1040 = vadd.f32 %v355, %v1033
    %v1041 = vadd.f32 %v381, %v1033
    %v1042 = vadd.f32 %v407, %v1033
    %v1043 = vadd.f32 %v433, %v1033
    %v1044 = vadd.f32 %v459, %v1033
    %v1045 = vadd.f32 %v485, %v1033
    %v1046 = vadd.f32 %v511, %v1033
    %v1047 = vadd.f32 %v537, %v1033
    %v1048 = vadd.f32 %v563, %v1033
    %v1049 = vadd.f32 %v589, %v1033
    %v1050 = vadd.f32 %v615, %v1033
    %v1051 = vadd.f32 %v641, %v1034
    %v1052 = vadd.f32 %v667, %v1034
    %v1053 = vadd.f32 %v693, %v1034
    %v1054 = vadd.f32 %v719, %v1034
    %v1055 = vadd.f32 %v745, %v1034
    %v1056 = vadd.f32 %v771, %v1034
    %v1057 = vadd.f32 %v797, %v1034
    %v1058 = vadd.f32 %v823, %v1034
    %v1059 = vadd.f32 %v849, %v1034
    %v1060 = vadd.f32 %v875, %v1034
    %v1061 = vadd.f32 %v901, %v1034
    %v1062 = vadd.f32 %v927, %v1034
    %v1063 = vadd.f32 %v953, %v1034
    %v1064 = vadd.f32 %v979, %v1034
    %v1065 = vadd.f32 %v1005, %v1034
    %v1066 = vadd.f32 %v1031, %v1034
    %vm1067 = vcmask 64512
    %v1068 = vsel %vm1067, %v1035, -inf
    %1069 = vmax.xlane.f32.xlu0 %v1068
    %v1070 = vpop.xlane.xlu0 %1069
    %v1071 = vsel %vm1067, %v1036, -inf
    %1072 = vmax.xlane.f32.xlu0 %v1071
    %v1073 = vpop.xlane.xlu0 %1072
    %v1074 = vsel %vm1067, %v1037, -inf
    %1075 = vmax.xlane.f32.xlu0 %v1074
    %v1076 = vpop.xlane.xlu0 %1075
    %v1077 = vsel %vm1067, %v1038, -inf
    %1078 = vmax.xlane.f32.xlu0 %v1077
    %v1079 = vpop.xlane.xlu0 %1078
    %v1080 = vsel %vm1067, %v1039, -inf
    %1081 = vmax.xlane.f32.xlu0 %v1080
    %v1082 = vpop.xlane.xlu0 %1081
    %v1083 = vsel %vm1067, %v1040, -inf
    %1084 = vmax.xlane.f32.xlu0 %v1083
    %v1085 = vpop.xlane.xlu0 %1084
    %v1086 = vsel %vm1067, %v1041, -inf
    %1087 = vmax.xlane.f32.xlu0 %v1086
    %v1088 = vpop.xlane.xlu0 %1087
    %v1089 = vsel %vm1067, %v1042, -inf
    %1090 = vmax.xlane.f32.xlu0 %v1089
    %v1091 = vpop.xlane.xlu0 %1090
    %v1092 = vsel %vm1067, %v1043, -inf
    %1093 = vmax.xlane.f32.xlu0 %v1092
    %v1094 = vpop.xlane.xlu0 %1093
    %v1095 = vsel %vm1067, %v1044, -inf
    %1096 = vmax.xlane.f32.xlu0 %v1095
    %v1097 = vpop.xlane.xlu0 %1096
    %v1098 = vsel %vm1067, %v1045, -inf
    %1099 = vmax.xlane.f32.xlu0 %v1098
    %v1100 = vpop.xlane.xlu0 %1099
    %v1101 = vsel %vm1067, %v1046, -inf
    %1102 = vmax.xlane.f32.xlu0 %v1101
    %v1103 = vpop.xlane.xlu0 %1102
    %v1104 = vsel %vm1067, %v1047, -inf
    %1105 = vmax.xlane.f32.xlu0 %v1104
    %v1106 = vpop.xlane.xlu0 %1105
    %v1107 = vsel %vm1067, %v1048, -inf
    %1108 = vmax.xlane.f32.xlu0 %v1107
    %v1109 = vpop.xlane.xlu0 %1108
    %v1110 = vsel %vm1067, %v1049, -inf
    %1111 = vmax.xlane.f32.xlu0 %v1110
    %v1112 = vpop.xlane.xlu0 %1111
    %v1113 = vsel %vm1067, %v1050, -inf
    %1114 = vmax.xlane.f32.xlu0 %v1113
    %v1115 = vpop.xlane.xlu0 %1114
    %v1116 = vsel %vm1067, %v1051, -inf
    %1117 = vmax.xlane.f32.xlu0 %v1116
    %v1118 = vpop.xlane.xlu0 %1117
    %v1119 = vsel %vm1067, %v1052, -inf
    %1120 = vmax.xlane.f32.xlu0 %v1119
    %v1121 = vpop.xlane.xlu0 %1120
    %v1122 = vsel %vm1067, %v1053, -inf
    %1123 = vmax.xlane.f32.xlu0 %v1122
    %v1124 = vpop.xlane.xlu0 %1123
    %v1125 = vsel %vm1067, %v1054, -inf
    %1126 = vmax.xlane.f32.xlu0 %v1125
    %v1127 = vpop.xlane.xlu0 %1126
    %v1128 = vsel %vm1067, %v1055, -inf
    %1129 = vmax.xlane.f32.xlu0 %v1128
    %v1130 = vpop.xlane.xlu0 %1129
    %v1131 = vsel %vm1067, %v1056, -inf
    %1132 = vmax.xlane.f32.xlu0 %v1131
    %v1133 = vpop.xlane.xlu0 %1132
    %v1134 = vsel %vm1067, %v1057, -inf
    %1135 = vmax.xlane.f32.xlu0 %v1134
    %v1136 = vpop.xlane.xlu0 %1135
    %v1137 = vsel %vm1067, %v1058, -inf
    %1138 = vmax.xlane.f32.xlu0 %v1137
    %v1139 = vpop.xlane.xlu0 %1138
    %v1140 = vsel %vm1067, %v1059, -inf
    %1141 = vmax.xlane.f32.xlu0 %v1140
    %v1142 = vpop.xlane.xlu0 %1141
    %v1143 = vsel %vm1067, %v1060, -inf
    %1144 = vmax.xlane.f32.xlu0 %v1143
    %v1145 = vpop.xlane.xlu0 %1144
    %v1146 = vsel %vm1067, %v1061, -inf
    %1147 = vmax.xlane.f32.xlu0 %v1146
    %v1148 = vpop.xlane.xlu0 %1147
    %v1149 = vsel %vm1067, %v1062, -inf
    %1150 = vmax.xlane.f32.xlu0 %v1149
    %v1151 = vpop.xlane.xlu0 %1150
    %v1152 = vsel %vm1067, %v1063, -inf
    %1153 = vmax.xlane.f32.xlu0 %v1152
    %v1154 = vpop.xlane.xlu0 %1153
    %v1155 = vsel %vm1067, %v1064, -inf
    %1156 = vmax.xlane.f32.xlu0 %v1155
    %v1157 = vpop.xlane.xlu0 %1156
    %v1158 = vsel %vm1067, %v1065, -inf
    %1159 = vmax.xlane.f32.xlu0 %v1158
    %v1160 = vpop.xlane.xlu0 %1159
    %v1161 = vsel %vm1067, %v1066, -inf
    %1162 = vmax.xlane.f32.xlu0 %v1161
    %v1163 = vpop.xlane.xlu0 %1162
    %v1164 = vsub.f32 %v1035, %v1070
    %v1165 = vsub.f32 %v1036, %v1073
    %v1166 = vsub.f32 %v1037, %v1076
    %v1167 = vsub.f32 %v1038, %v1079
    %v1168 = vsub.f32 %v1039, %v1082
    %v1169 = vsub.f32 %v1040, %v1085
    %v1170 = vsub.f32 %v1041, %v1088
    %v1171 = vsub.f32 %v1042, %v1091
    %v1172 = vsub.f32 %v1043, %v1094
    %v1173 = vsub.f32 %v1044, %v1097
    %v1174 = vsub.f32 %v1045, %v1100
    %v1175 = vsub.f32 %v1046, %v1103
    %v1176 = vsub.f32 %v1047, %v1106
    %v1177 = vsub.f32 %v1048, %v1109
    %v1178 = vsub.f32 %v1049, %v1112
    %v1179 = vsub.f32 %v1050, %v1115
    %v1180 = vsub.f32 %v1051, %v1118
    %v1181 = vsub.f32 %v1052, %v1121
    %v1182 = vsub.f32 %v1053, %v1124
    %v1183 = vsub.f32 %v1054, %v1127
    %v1184 = vsub.f32 %v1055, %v1130
    %v1185 = vsub.f32 %v1056, %v1133
    %v1186 = vsub.f32 %v1057, %v1136
    %v1187 = vsub.f32 %v1058, %v1139
    %v1188 = vsub.f32 %v1059, %v1142
    %v1189 = vsub.f32 %v1060, %v1145
    %v1190 = vsub.f32 %v1061, %v1148
    %v1191 = vsub.f32 %v1062, %v1151
    %v1192 = vsub.f32 %v1063, %v1154
    %v1193 = vsub.f32 %v1064, %v1157
    %v1194 = vsub.f32 %v1065, %v1160
    %v1195 = vsub.f32 %v1066, %v1163
    %v1196 = vmul.f32 %v1164, 1.442695
    %v1197 = vpow.pop %v1196
    %v1198 = vmul.f32 %v1165, 1.442695
    %v1199 = vpow.pop %v1198
    %v1200 = vmul.f32 %v1166, 1.442695
    %v1201 = vpow.pop %v1200
    %v1202 = vmul.f32 %v1167, 1.442695
    %v1203 = vpow.pop %v1202
    %v1204 = vmul.f32 %v1168, 1.442695
    %v1205 = vpow.pop %v1204
    %v1206 = vmul.f32 %v1169, 1.442695
    %v1207 = vpow.pop %v1206
    %v1208 = vmul.f32 %v1170, 1.442695
    %v1209 = vpow.pop %v1208
    %v1210 = vmul.f32 %v1171, 1.442695
    %v1211 = vpow.pop %v1210
    %v1212 = vmul.f32 %v1172, 1.442695
    %v1213 = vpow.pop %v1212
    %v1214 = vmul.f32 %v1173, 1.442695
    %v1215 = vpow.pop %v1214
    %v1216 = vmul.f32 %v1174, 1.442695
    %v1217 = vpow.pop %v1216
    %v1218 = vmul.f32 %v1175, 1.442695
    %v1219 = vpow.pop %v1218
    %v1220 = vmul.f32 %v1176, 1.442695
    %v1221 = vpow.pop %v1220
    %v1222 = vmul.f32 %v1177, 1.442695
    %v1223 = vpow.pop %v1222
    %v1224 = vmul.f32 %v1178, 1.442695
    %v1225 = vpow.pop %v1224
    %v1226 = vmul.f32 %v1179, 1.442695
    %v1227 = vpow.pop %v1226
    %v1228 = vmul.f32 %v1180, 1.442695
    %v1229 = vpow.pop %v1228
    %v1230 = vmul.f32 %v1181, 1.442695
    %v1231 = vpow.pop %v1230
    %v1232 = vmul.f32 %v1182, 1.442695
    %v1233 = vpow.pop %v1232
    %v1234 = vmul.f32 %v1183, 1.442695
    %v1235 = vpow.pop %v1234
    %v1236 = vmul.f32 %v1184, 1.442695
    %v1237 = vpow.pop %v1236
    %v1238 = vmul.f32 %v1185, 1.442695
    %v1239 = vpow.pop %v1238
    %v1240 = vmul.f32 %v1186, 1.442695
    %v1241 = vpow.pop %v1240
    %v1242 = vmul.f32 %v1187, 1.442695
    %v1243 = vpow.pop %v1242
    %v1244 = vmul.f32 %v1188, 1.442695
    %v1245 = vpow.pop %v1244
    %v1246 = vmul.f32 %v1189, 1.442695
    %v1247 = vpow.pop %v1246
    %v1248 = vmul.f32 %v1190, 1.442695
    %v1249 = vpow.pop %v1248
    %v1250 = vmul.f32 %v1191, 1.442695
    %v1251 = vpow.pop %v1250
    %v1252 = vmul.f32 %v1192, 1.442695
    %v1253 = vpow.pop %v1252
    %v1254 = vmul.f32 %v1193, 1.442695
    %v1255 = vpow.pop %v1254
    %v1256 = vmul.f32 %v1194, 1.442695
    %v1257 = vpow.pop %v1256
    %v1258 = vmul.f32 %v1195, 1.442695
    %v1259 = vpow.pop %v1258
    %v1260 = vsel %vm1067, %v1197, 0.0
    %1261 = vadd.xlane.f32.xlu0 %v1260
    %v1262 = vpop.xlane.xlu0 %1261
    %v1263 = vsel %vm1067, %v1199, 0.0
    %1264 = vadd.xlane.f32.xlu0 %v1263
    %v1265 = vpop.xlane.xlu0 %1264
    %v1266 = vsel %vm1067, %v1201, 0.0
    %1267 = vadd.xlane.f32.xlu0 %v1266
    %v1268 = vpop.xlane.xlu0 %1267
    %v1269 = vsel %vm1067, %v1203, 0.0
    %1270 = vadd.xlane.f32.xlu0 %v1269
    %v1271 = vpop.xlane.xlu0 %1270
    %v1272 = vsel %vm1067, %v1205, 0.0
    %1273 = vadd.xlane.f32.xlu0 %v1272
    %v1274 = vpop.xlane.xlu0 %1273
    %v1275 = vsel %vm1067, %v1207, 0.0
    %1276 = vadd.xlane.f32.xlu0 %v1275
    %v1277 = vpop.xlane.xlu0 %1276
    %v1278 = vsel %vm1067, %v1209, 0.0
    %1279 = vadd.xlane.f32.xlu0 %v1278
    %v1280 = vpop.xlane.xlu0 %1279
    %v1281 = vsel %vm1067, %v1211, 0.0
    %1282 = vadd.xlane.f32.xlu0 %v1281
    %v1283 = vpop.xlane.xlu0 %1282
    %v1284 = vsel %vm1067, %v1213, 0.0
    %1285 = vadd.xlane.f32.xlu0 %v1284
    %v1286 = vpop.xlane.xlu0 %1285
    %v1287 = vsel %vm1067, %v1215, 0.0
    %1288 = vadd.xlane.f32.xlu0 %v1287
    %v1289 = vpop.xlane.xlu0 %1288
    %v1290 = vsel %vm1067, %v1217, 0.0
    %1291 = vadd.xlane.f32.xlu0 %v1290
    %v1292 = vpop.xlane.xlu0 %1291
    %v1293 = vsel %vm1067, %v1219, 0.0
    %1294 = vadd.xlane.f32.xlu0 %v1293
    %v1295 = vpop.xlane.xlu0 %1294
    %v1296 = vsel %vm1067, %v1221, 0.0
    %1297 = vadd.xlane.f32.xlu0 %v1296
    %v1298 = vpop.xlane.xlu0 %1297
    %v1299 = vsel %vm1067, %v1223, 0.0
    %1300 = vadd.xlane.f32.xlu0 %v1299
    %v1301 = vpop.xlane.xlu0 %1300
    %v1302 = vsel %vm1067, %v1225, 0.0
    %1303 = vadd.xlane.f32.xlu0 %v1302
    %v1304 = vpop.xlane.xlu0 %1303
    %v1305 = vsel %vm1067, %v1227, 0.0
    %1306 = vadd.xlane.f32.xlu0 %v1305
    %v1307 = vpop.xlane.xlu0 %1306
    %v1308 = vsel %vm1067, %v1229, 0.0
    %1309 = vadd.xlane.f32.xlu0 %v1308
    %v1310 = vpop.xlane.xlu0 %1309
    %v1311 = vsel %vm1067, %v1231, 0.0
    %1312 = vadd.xlane.f32.xlu0 %v1311
    %v1313 = vpop.xlane.xlu0 %1312
    %v1314 = vsel %vm1067, %v1233, 0.0
    %1315 = vadd.xlane.f32.xlu0 %v1314
    %v1316 = vpop.xlane.xlu0 %1315
    %v1317 = vsel %vm1067, %v1235, 0.0
    %1318 = vadd.xlane.f32.xlu0 %v1317
    %v1319 = vpop.xlane.xlu0 %1318
    %v1320 = vsel %vm1067, %v1237, 0.0
    %1321 = vadd.xlane.f32.xlu0 %v1320
    %v1322 = vpop.xlane.xlu0 %1321
    %v1323 = vsel %vm1067, %v1239, 0.0
    %1324 = vadd.xlane.f32.xlu0 %v1323
    %v1325 = vpop.xlane.xlu0 %1324
    %v1326 = vsel %vm1067, %v1241, 0.0
    %1327 = vadd.xlane.f32.xlu0 %v1326
    %v1328 = vpop.xlane.xlu0 %1327
    %v1329 = vsel %vm1067, %v1243, 0.0
    %1330 = vadd.xlane.f32.xlu0 %v1329
    %v1331 = vpop.xlane.xlu0 %1330
    %v1332 = vsel %vm1067, %v1245, 0.0
    %1333 = vadd.xlane.f32.xlu0 %v1332
    %v1334 = vpop.xlane.xlu0 %1333
    %v1335 = vsel %vm1067, %v1247, 0.0
    %1336 = vadd.xlane.f32.xlu0 %v1335
    %v1337 = vpop.xlane.xlu0 %1336
    %v1338 = vsel %vm1067, %v1249, 0.0
    %1339 = vadd.xlane.f32.xlu0 %v1338
    %v1340 = vpop.xlane.xlu0 %1339
    %v1341 = vsel %vm1067, %v1251, 0.0
    %1342 = vadd.xlane.f32.xlu0 %v1341
    %v1343 = vpop.xlane.xlu0 %1342
    %v1344 = vsel %vm1067, %v1253, 0.0
    %1345 = vadd.xlane.f32.xlu0 %v1344
    %v1346 = vpop.xlane.xlu0 %1345
    %v1347 = vsel %vm1067, %v1255, 0.0
    %1348 = vadd.xlane.f32.xlu0 %v1347
    %v1349 = vpop.xlane.xlu0 %1348
    %v1350 = vsel %vm1067, %v1257, 0.0
    %1351 = vadd.xlane.f32.xlu0 %v1350
    %v1352 = vpop.xlane.xlu0 %1351
    %v1353 = vsel %vm1067, %v1259, 0.0
    %1354 = vadd.xlane.f32.xlu0 %v1353
    %v1355 = vpop.xlane.xlu0 %1354
    %v1356 = vrcp.pop %v1262
    %v1357 = vrcp.pop %v1265
    %v1358 = vrcp.pop %v1268
    %v1359 = vrcp.pop %v1271
    %v1360 = vrcp.pop %v1274
    %v1361 = vrcp.pop %v1277
    %v1362 = vrcp.pop %v1280
    %v1363 = vrcp.pop %v1283
    %v1364 = vrcp.pop %v1286
    %v1365 = vrcp.pop %v1289
    %v1366 = vrcp.pop %v1292
    %v1367 = vrcp.pop %v1295
    %v1368 = vrcp.pop %v1298
    %v1369 = vrcp.pop %v1301
    %v1370 = vrcp.pop %v1304
    %v1371 = vrcp.pop %v1307
    %v1372 = vrcp.pop %v1310
    %v1373 = vrcp.pop %v1313
    %v1374 = vrcp.pop %v1316
    %v1375 = vrcp.pop %v1319
    %v1376 = vrcp.pop %v1322
    %v1377 = vrcp.pop %v1325
    %v1378 = vrcp.pop %v1328
    %v1379 = vrcp.pop %v1331
    %v1380 = vrcp.pop %v1334
    %v1381 = vrcp.pop %v1337
    %v1382 = vrcp.pop %v1340
    %v1383 = vrcp.pop %v1343
    %v1384 = vrcp.pop %v1346
    %v1385 = vrcp.pop %v1349
    %v1386 = vrcp.pop %v1352
    %v1387 = vrcp.pop %v1355
    %v1388 = vmul.f32 %v1197, %v1356
    %v1389 = vmul.f32 %v1199, %v1357
    %v1390 = vmul.f32 %v1201, %v1358
    %v1391 = vmul.f32 %v1203, %v1359
    %v1392 = vmul.f32 %v1205, %v1360
    %v1393 = vmul.f32 %v1207, %v1361
    %v1394 = vmul.f32 %v1209, %v1362
    %v1395 = vmul.f32 %v1211, %v1363
    %v1396 = vmul.f32 %v1213, %v1364
    %v1397 = vmul.f32 %v1215, %v1365
    %v1398 = vmul.f32 %v1217, %v1366
    %v1399 = vmul.f32 %v1219, %v1367
    %v1400 = vmul.f32 %v1221, %v1368
    %v1401 = vmul.f32 %v1223, %v1369
    %v1402 = vmul.f32 %v1225, %v1370
    %v1403 = vmul.f32 %v1227, %v1371
    %v1404 = vmul.f32 %v1229, %v1372
    %v1405 = vmul.f32 %v1231, %v1373
    %v1406 = vmul.f32 %v1233, %v1374
    %v1407 = vmul.f32 %v1235, %v1375
    %v1408 = vmul.f32 %v1237, %v1376
    %v1409 = vmul.f32 %v1239, %v1377
    %v1410 = vmul.f32 %v1241, %v1378
    %v1411 = vmul.f32 %v1243, %v1379
    %v1412 = vmul.f32 %v1245, %v1380
    %v1413 = vmul.f32 %v1247, %v1381
    %v1414 = vmul.f32 %v1249, %v1382
    %v1415 = vmul.f32 %v1251, %v1383
    %v1416 = vmul.f32 %v1253, %v1384
    %v1417 = vmul.f32 %v1255, %v1385
    %v1418 = vmul.f32 %v1257, %v1386
    %v1419 = vmul.f32 %v1259, %v1387
    %1420 = vrot.lane.b32.xlu0 %v105, 64
    %v1421 = vpop.permute.xlu0 %1420
    %v1424 = vsel %vm1067, %v1388, 0
    %1426 = vmatpush.msra.mxu0 0.0
    %1427 = vmatpush.msra.mxu0 0.0
    %1428 = vmatpush.msra.mxu0 0.0
    %1429 = vmatpush.msra.mxu0 0.0
    %1430 = vmatpush.msra.mxu0 0.0
    %1431 = vmatpush.msra.mxu0 0.0
    %1432 = vmatpush.msra.mxu0 0.0
    %1433 = vmatpush.msra.mxu0 0.0
    %1434 = vmatpush.msra.mxu0 0.0
    %1435 = vmatpush.msra.mxu0 0.0
    %1436 = vmatpush.msra.mxu0 0.0
    %1437 = vmatpush.msra.mxu0 0.0
    %1438 = vmatpush.msra.mxu0 0.0
    %1439 = vmatpush.msra.mxu0 0.0
    %1440 = vmatpush.msra.mxu0 0.0
    %1441 = vmatpush.msra.mxu0 %v1421
    %1442 = vmatmul.f32.gmra.mxu0 %v1424
    %v1443 = vpop.f32.mrf.mxu0
    %v1444 = vadd.f32 0.0, %v1443
    %1445 = vdwg.mxu0
    %1446 = vrot.lane.b32.xlu0 %v108, 64
    %v1447 = vpop.permute.xlu0 %1446
    %v1450 = vsel %vm1067, %v1389, 0
    %1452 = vmatpush.msra.mxu0 0.0
    %1453 = vmatpush.msra.mxu0 0.0
    %1454 = vmatpush.msra.mxu0 0.0
    %1455 = vmatpush.msra.mxu0 0.0
    %1456 = vmatpush.msra.mxu0 0.0
    %1457 = vmatpush.msra.mxu0 0.0
    %1458 = vmatpush.msra.mxu0 0.0
    %1459 = vmatpush.msra.mxu0 0.0
    %1460 = vmatpush.msra.mxu0 0.0
    %1461 = vmatpush.msra.mxu0 0.0
    %1462 = vmatpush.msra.mxu0 0.0
    %1463 = vmatpush.msra.mxu0 0.0
    %1464 = vmatpush.msra.mxu0 0.0
    %1465 = vmatpush.msra.mxu0 0.0
    %1466 = vmatpush.msra.mxu0 0.0
    %1467 = vmatpush.msra.mxu0 %v1447
    %1468 = vmatmul.f32.gmra.mxu0 %v1450
    %v1469 = vpop.f32.mrf.mxu0
    %v1470 = vadd.f32 0.0, %v1469
    %1471 = vdwg.mxu0
    %1472 = vrot.lane.b32.xlu0 %v111, 64
    %v1473 = vpop.permute.xlu0 %1472
    %v1476 = vsel %vm1067, %v1390, 0
    %1478 = vmatpush.msra.mxu0 0.0
    %1479 = vmatpush.msra.mxu0 0.0
    %1480 = vmatpush.msra.mxu0 0.0
    %1481 = vmatpush.msra.mxu0 0.0
    %1482 = vmatpush.msra.mxu0 0.0
    %1483 = vmatpush.msra.mxu0 0.0
    %1484 = vmatpush.msra.mxu0 0.0
    %1485 = vmatpush.msra.mxu0 0.0
    %1486 = vmatpush.msra.mxu0 0.0
    %1487 = vmatpush.msra.mxu0 0.0
    %1488 = vmatpush.msra.mxu0 0.0
    %1489 = vmatpush.msra.mxu0 0.0
    %1490 = vmatpush.msra.mxu0 0.0
    %1491 = vmatpush.msra.mxu0 0.0
    %1492 = vmatpush.msra.mxu0 0.0
    %1493 = vmatpush.msra.mxu0 %v1473
    %1494 = vmatmul.f32.gmra.mxu0 %v1476
    %v1495 = vpop.f32.mrf.mxu0
    %v1496 = vadd.f32 0.0, %v1495
    %1497 = vdwg.mxu0
    %1498 = vrot.lane.b32.xlu0 %v114, 64
    %v1499 = vpop.permute.xlu0 %1498
    %v1502 = vsel %vm1067, %v1391, 0
    %1504 = vmatpush.msra.mxu0 0.0
    %1505 = vmatpush.msra.mxu0 0.0
    %1506 = vmatpush.msra.mxu0 0.0
    %1507 = vmatpush.msra.mxu0 0.0
    %1508 = vmatpush.msra.mxu0 0.0
    %1509 = vmatpush.msra.mxu0 0.0
    %1510 = vmatpush.msra.mxu0 0.0
    %1511 = vmatpush.msra.mxu0 0.0
    %1512 = vmatpush.msra.mxu0 0.0
    %1513 = vmatpush.msra.mxu0 0.0
    %1514 = vmatpush.msra.mxu0 0.0
    %1515 = vmatpush.msra.mxu0 0.0
    %1516 = vmatpush.msra.mxu0 0.0
    %1517 = vmatpush.msra.mxu0 0.0
    %1518 = vmatpush.msra.mxu0 0.0
    %1519 = vmatpush.msra.mxu0 %v1499
    %1520 = vmatmul.f32.gmra.mxu0 %v1502
    %v1521 = vpop.f32.mrf.mxu0
    %v1522 = vadd.f32 0.0, %v1521
    %1523 = vdwg.mxu0
    %1524 = vrot.lane.b32.xlu0 %v117, 64
    %v1525 = vpop.permute.xlu0 %1524
    %v1528 = vsel %vm1067, %v1392, 0
    %1530 = vmatpush.msra.mxu0 0.0
    %1531 = vmatpush.msra.mxu0 0.0
    %1532 = vmatpush.msra.mxu0 0.0
    %1533 = vmatpush.msra.mxu0 0.0
    %1534 = vmatpush.msra.mxu0 0.0
    %1535 = vmatpush.msra.mxu0 0.0
    %1536 = vmatpush.msra.mxu0 0.0
    %1537 = vmatpush.msra.mxu0 0.0
    %1538 = vmatpush.msra.mxu0 0.0
    %1539 = vmatpush.msra.mxu0 0.0
    %1540 = vmatpush.msra.mxu0 0.0
    %1541 = vmatpush.msra.mxu0 0.0
    %1542 = vmatpush.msra.mxu0 0.0
    %1543 = vmatpush.msra.mxu0 0.0
    %1544 = vmatpush.msra.mxu0 0.0
    %1545 = vmatpush.msra.mxu0 %v1525
    %1546 = vmatmul.f32.gmra.mxu0 %v1528
    %v1547 = vpop.f32.mrf.mxu0
    %v1548 = vadd.f32 0.0, %v1547
    %1549 = vdwg.mxu0
    %1550 = vrot.lane.b32.xlu0 %v120, 64
    %v1551 = vpop.permute.xlu0 %1550
    %v1554 = vsel %vm1067, %v1393, 0
    %1556 = vmatpush.msra.mxu0 0.0
    %1557 = vmatpush.msra.mxu0 0.0
    %1558 = vmatpush.msra.mxu0 0.0
    %1559 = vmatpush.msra.mxu0 0.0
    %1560 = vmatpush.msra.mxu0 0.0
    %1561 = vmatpush.msra.mxu0 0.0
    %1562 = vmatpush.msra.mxu0 0.0
    %1563 = vmatpush.msra.mxu0 0.0
    %1564 = vmatpush.msra.mxu0 0.0
    %1565 = vmatpush.msra.mxu0 0.0
    %1566 = vmatpush.msra.mxu0 0.0
    %1567 = vmatpush.msra.mxu0 0.0
    %1568 = vmatpush.msra.mxu0 0.0
    %1569 = vmatpush.msra.mxu0 0.0
    %1570 = vmatpush.msra.mxu0 0.0
    %1571 = vmatpush.msra.mxu0 %v1551
    %1572 = vmatmul.f32.gmra.mxu0 %v1554
    %v1573 = vpop.f32.mrf.mxu0
    %v1574 = vadd.f32 0.0, %v1573
    %1575 = vdwg.mxu0
    %1576 = vrot.lane.b32.xlu0 %v123, 64
    %v1577 = vpop.permute.xlu0 %1576
    %v1580 = vsel %vm1067, %v1394, 0
    %1582 = vmatpush.msra.mxu0 0.0
    %1583 = vmatpush.msra.mxu0 0.0
    %1584 = vmatpush.msra.mxu0 0.0
    %1585 = vmatpush.msra.mxu0 0.0
    %1586 = vmatpush.msra.mxu0 0.0
    %1587 = vmatpush.msra.mxu0 0.0
    %1588 = vmatpush.msra.mxu0 0.0
    %1589 = vmatpush.msra.mxu0 0.0
    %1590 = vmatpush.msra.mxu0 0.0
    %1591 = vmatpush.msra.mxu0 0.0
    %1592 = vmatpush.msra.mxu0 0.0
    %1593 = vmatpush.msra.mxu0 0.0
    %1594 = vmatpush.msra.mxu0 0.0
    %1595 = vmatpush.msra.mxu0 0.0
    %1596 = vmatpush.msra.mxu0 0.0
    %1597 = vmatpush.msra.mxu0 %v1577
    %1598 = vmatmul.f32.gmra.mxu0 %v1580
    %v1599 = vpop.f32.mrf.mxu0
    %v1600 = vadd.f32 0.0, %v1599
    %1601 = vdwg.mxu0
    %1602 = vrot.lane.b32.xlu0 %v126, 64
    %v1603 = vpop.permute.xlu0 %1602
    %v1606 = vsel %vm1067, %v1395, 0
    %1608 = vmatpush.msra.mxu0 0.0
    %1609 = vmatpush.msra.mxu0 0.0
    %1610 = vmatpush.msra.mxu0 0.0
    %1611 = vmatpush.msra.mxu0 0.0
    %1612 = vmatpush.msra.mxu0 0.0
    %1613 = vmatpush.msra.mxu0 0.0
    %1614 = vmatpush.msra.mxu0 0.0
    %1615 = vmatpush.msra.mxu0 0.0
    %1616 = vmatpush.msra.mxu0 0.0
    %1617 = vmatpush.msra.mxu0 0.0
    %1618 = vmatpush.msra.mxu0 0.0
    %1619 = vmatpush.msra.mxu0 0.0
    %1620 = vmatpush.msra.mxu0 0.0
    %1621 = vmatpush.msra.mxu0 0.0
    %1622 = vmatpush.msra.mxu0 0.0
    %1623 = vmatpush.msra.mxu0 %v1603
    %1624 = vmatmul.f32.gmra.mxu0 %v1606
    %v1625 = vpop.f32.mrf.mxu0
    %v1626 = vadd.f32 0.0, %v1625
    %1627 = vdwg.mxu0
    %1628 = vrot.lane.b32.xlu0 %v129, 64
    %v1629 = vpop.permute.xlu0 %1628
    %v1632 = vsel %vm1067, %v1396, 0
    %1634 = vmatpush.msra.mxu0 0.0
    %1635 = vmatpush.msra.mxu0 0.0
    %1636 = vmatpush.msra.mxu0 0.0
    %1637 = vmatpush.msra.mxu0 0.0
    %1638 = vmatpush.msra.mxu0 0.0
    %1639 = vmatpush.msra.mxu0 0.0
    %1640 = vmatpush.msra.mxu0 0.0
    %1641 = vmatpush.msra.mxu0 0.0
    %1642 = vmatpush.msra.mxu0 0.0
    %1643 = vmatpush.msra.mxu0 0.0
    %1644 = vmatpush.msra.mxu0 0.0
    %1645 = vmatpush.msra.mxu0 0.0
    %1646 = vmatpush.msra.mxu0 0.0
    %1647 = vmatpush.msra.mxu0 0.0
    %1648 = vmatpush.msra.mxu0 0.0
    %1649 = vmatpush.msra.mxu0 %v1629
    %1650 = vmatmul.f32.gmra.mxu0 %v1632
    %v1651 = vpop.f32.mrf.mxu0
    %v1652 = vadd.f32 0.0, %v1651
    %1653 = vdwg.mxu0
    %1654 = vrot.lane.b32.xlu0 %v132, 64
    %v1655 = vpop.permute.xlu0 %1654
    %v1658 = vsel %vm1067, %v1397, 0
    %1660 = vmatpush.msra.mxu0 0.0
    %1661 = vmatpush.msra.mxu0 0.0
    %1662 = vmatpush.msra.mxu0 0.0
    %1663 = vmatpush.msra.mxu0 0.0
    %1664 = vmatpush.msra.mxu0 0.0
    %1665 = vmatpush.msra.mxu0 0.0
    %1666 = vmatpush.msra.mxu0 0.0
    %1667 = vmatpush.msra.mxu0 0.0
    %1668 = vmatpush.msra.mxu0 0.0
    %1669 = vmatpush.msra.mxu0 0.0
    %1670 = vmatpush.msra.mxu0 0.0
    %1671 = vmatpush.msra.mxu0 0.0
    %1672 = vmatpush.msra.mxu0 0.0
    %1673 = vmatpush.msra.mxu0 0.0
    %1674 = vmatpush.msra.mxu0 0.0
    %1675 = vmatpush.msra.mxu0 %v1655
    %1676 = vmatmul.f32.gmra.mxu0 %v1658
    %v1677 = vpop.f32.mrf.mxu0
    %v1678 = vadd.f32 0.0, %v1677
    %1679 = vdwg.mxu0
    %1680 = vrot.lane.b32.xlu0 %v135, 64
    %v1681 = vpop.permute.xlu0 %1680
    %v1684 = vsel %vm1067, %v1398, 0
    %1686 = vmatpush.msra.mxu0 0.0
    %1687 = vmatpush.msra.mxu0 0.0
    %1688 = vmatpush.msra.mxu0 0.0
    %1689 = vmatpush.msra.mxu0 0.0
    %1690 = vmatpush.msra.mxu0 0.0
    %1691 = vmatpush.msra.mxu0 0.0
    %1692 = vmatpush.msra.mxu0 0.0
    %1693 = vmatpush.msra.mxu0 0.0
    %1694 = vmatpush.msra.mxu0 0.0
    %1695 = vmatpush.msra.mxu0 0.0
    %1696 = vmatpush.msra.mxu0 0.0
    %1697 = vmatpush.msra.mxu0 0.0
    %1698 = vmatpush.msra.mxu0 0.0
    %1699 = vmatpush.msra.mxu0 0.0
    %1700 = vmatpush.msra.mxu0 0.0
    %1701 = vmatpush.msra.mxu0 %v1681
    %1702 = vmatmul.f32.gmra.mxu0 %v1684
    %v1703 = vpop.f32.mrf.mxu0
    %v1704 = vadd.f32 0.0, %v1703
    %1705 = vdwg.mxu0
    %1706 = vrot.lane.b32.xlu0 %v138, 64
    %v1707 = vpop.permute.xlu0 %1706
    %v1710 = vsel %vm1067, %v1399, 0
    %1712 = vmatpush.msra.mxu0 0.0
    %1713 = vmatpush.msra.mxu0 0.0
    %1714 = vmatpush.msra.mxu0 0.0
    %1715 = vmatpush.msra.mxu0 0.0
    %1716 = vmatpush.msra.mxu0 0.0
    %1717 = vmatpush.msra.mxu0 0.0
    %1718 = vmatpush.msra.mxu0 0.0
    %1719 = vmatpush.msra.mxu0 0.0
    %1720 = vmatpush.msra.mxu0 0.0
    %1721 = vmatpush.msra.mxu0 0.0
    %1722 = vmatpush.msra.mxu0 0.0
    %1723 = vmatpush.msra.mxu0 0.0
    %1724 = vmatpush.msra.mxu0 0.0
    %1725 = vmatpush.msra.mxu0 0.0
    %1726 = vmatpush.msra.mxu0 0.0
    %1727 = vmatpush.msra.mxu0 %v1707
    %1728 = vmatmul.f32.gmra.mxu0 %v1710
    %v1729 = vpop.f32.mrf.mxu0
    %v1730 = vadd.f32 0.0, %v1729
    %1731 = vdwg.mxu0
    %1732 = vrot.lane.b32.xlu0 %v141, 64
    %v1733 = vpop.permute.xlu0 %1732
    %v1736 = vsel %vm1067, %v1400, 0
    %1738 = vmatpush.msra.mxu0 0.0
    %1739 = vmatpush.msra.mxu0 0.0
    %1740 = vmatpush.msra.mxu0 0.0
    %1741 = vmatpush.msra.mxu0 0.0
    %1742 = vmatpush.msra.mxu0 0.0
    %1743 = vmatpush.msra.mxu0 0.0
    %1744 = vmatpush.msra.mxu0 0.0
    %1745 = vmatpush.msra.mxu0 0.0
    %1746 = vmatpush.msra.mxu0 0.0
    %1747 = vmatpush.msra.mxu0 0.0
    %1748 = vmatpush.msra.mxu0 0.0
    %1749 = vmatpush.msra.mxu0 0.0
    %1750 = vmatpush.msra.mxu0 0.0
    %1751 = vmatpush.msra.mxu0 0.0
    %1752 = vmatpush.msra.mxu0 0.0
    %1753 = vmatpush.msra.mxu0 %v1733
    %1754 = vmatmul.f32.gmra.mxu0 %v1736
    %v1755 = vpop.f32.mrf.mxu0
    %v1756 = vadd.f32 0.0, %v1755
    %1757 = vdwg.mxu0
    %1758 = vrot.lane.b32.xlu0 %v144, 64
    %v1759 = vpop.permute.xlu0 %1758
    %v1762 = vsel %vm1067, %v1401, 0
    %1764 = vmatpush.msra.mxu0 0.0
    %1765 = vmatpush.msra.mxu0 0.0
    %1766 = vmatpush.msra.mxu0 0.0
    %1767 = vmatpush.msra.mxu0 0.0
    %1768 = vmatpush.msra.mxu0 0.0
    %1769 = vmatpush.msra.mxu0 0.0
    %1770 = vmatpush.msra.mxu0 0.0
    %1771 = vmatpush.msra.mxu0 0.0
    %1772 = vmatpush.msra.mxu0 0.0
    %1773 = vmatpush.msra.mxu0 0.0
    %1774 = vmatpush.msra.mxu0 0.0
    %1775 = vmatpush.msra.mxu0 0.0
    %1776 = vmatpush.msra.mxu0 0.0
    %1777 = vmatpush.msra.mxu0 0.0
    %1778 = vmatpush.msra.mxu0 0.0
    %1779 = vmatpush.msra.mxu0 %v1759
    %1780 = vmatmul.f32.gmra.mxu0 %v1762
    %v1781 = vpop.f32.mrf.mxu0
    %v1782 = vadd.f32 0.0, %v1781
    %1783 = vdwg.mxu0
    %1784 = vrot.lane.b32.xlu0 %v147, 64
    %v1785 = vpop.permute.xlu0 %1784
    %v1788 = vsel %vm1067, %v1402, 0
    %1790 = vmatpush.msra.mxu0 0.0
    %1791 = vmatpush.msra.mxu0 0.0
    %1792 = vmatpush.msra.mxu0 0.0
    %1793 = vmatpush.msra.mxu0 0.0
    %1794 = vmatpush.msra.mxu0 0.0
    %1795 = vmatpush.msra.mxu0 0.0
    %1796 = vmatpush.msra.mxu0 0.0
    %1797 = vmatpush.msra.mxu0 0.0
    %1798 = vmatpush.msra.mxu0 0.0
    %1799 = vmatpush.msra.mxu0 0.0
    %1800 = vmatpush.msra.mxu0 0.0
    %1801 = vmatpush.msra.mxu0 0.0
    %1802 = vmatpush.msra.mxu0 0.0
    %1803 = vmatpush.msra.mxu0 0.0
    %1804 = vmatpush.msra.mxu0 0.0
    %1805 = vmatpush.msra.mxu0 %v1785
    %1806 = vmatmul.f32.gmra.mxu0 %v1788
    %v1807 = vpop.f32.mrf.mxu0
    %v1808 = vadd.f32 0.0, %v1807
    %1809 = vdwg.mxu0
    %1810 = vrot.lane.b32.xlu0 %v150, 64
    %v1811 = vpop.permute.xlu0 %1810
    %v1814 = vsel %vm1067, %v1403, 0
    %1816 = vmatpush.msra.mxu0 0.0
    %1817 = vmatpush.msra.mxu0 0.0
    %1818 = vmatpush.msra.mxu0 0.0
    %1819 = vmatpush.msra.mxu0 0.0
    %1820 = vmatpush.msra.mxu0 0.0
    %1821 = vmatpush.msra.mxu0 0.0
    %1822 = vmatpush.msra.mxu0 0.0
    %1823 = vmatpush.msra.mxu0 0.0
    %1824 = vmatpush.msra.mxu0 0.0
    %1825 = vmatpush.msra.mxu0 0.0
    %1826 = vmatpush.msra.mxu0 0.0
    %1827 = vmatpush.msra.mxu0 0.0
    %1828 = vmatpush.msra.mxu0 0.0
    %1829 = vmatpush.msra.mxu0 0.0
    %1830 = vmatpush.msra.mxu0 0.0
    %1831 = vmatpush.msra.mxu0 %v1811
    %1832 = vmatmul.f32.gmra.mxu0 %v1814
    %v1833 = vpop.f32.mrf.mxu0
    %v1834 = vadd.f32 0.0, %v1833
    %1835 = vdwg.mxu0
    %1836 = vrot.lane.b32.xlu0 %v169, 64
    %v1837 = vpop.permute.xlu0 %1836
    %v1840 = vsel %vm1067, %v1404, 0
    %1842 = vmatpush.msra.mxu0 0.0
    %1843 = vmatpush.msra.mxu0 0.0
    %1844 = vmatpush.msra.mxu0 0.0
    %1845 = vmatpush.msra.mxu0 0.0
    %1846 = vmatpush.msra.mxu0 0.0
    %1847 = vmatpush.msra.mxu0 0.0
    %1848 = vmatpush.msra.mxu0 0.0
    %1849 = vmatpush.msra.mxu0 0.0
    %1850 = vmatpush.msra.mxu0 0.0
    %1851 = vmatpush.msra.mxu0 0.0
    %1852 = vmatpush.msra.mxu0 0.0
    %1853 = vmatpush.msra.mxu0 0.0
    %1854 = vmatpush.msra.mxu0 0.0
    %1855 = vmatpush.msra.mxu0 0.0
    %1856 = vmatpush.msra.mxu0 0.0
    %1857 = vmatpush.msra.mxu0 %v1837
    %1858 = vmatmul.f32.gmra.mxu0 %v1840
    %v1859 = vpop.f32.mrf.mxu0
    %v1860 = vadd.f32 0.0, %v1859
    %1861 = vdwg.mxu0
    %1862 = vrot.lane.b32.xlu0 %v171, 64
    %v1863 = vpop.permute.xlu0 %1862
    %v1866 = vsel %vm1067, %v1405, 0
    %1868 = vmatpush.msra.mxu0 0.0
    %1869 = vmatpush.msra.mxu0 0.0
    %1870 = vmatpush.msra.mxu0 0.0
    %1871 = vmatpush.msra.mxu0 0.0
    %1872 = vmatpush.msra.mxu0 0.0
    %1873 = vmatpush.msra.mxu0 0.0
    %1874 = vmatpush.msra.mxu0 0.0
    %1875 = vmatpush.msra.mxu0 0.0
    %1876 = vmatpush.msra.mxu0 0.0
    %1877 = vmatpush.msra.mxu0 0.0
    %1878 = vmatpush.msra.mxu0 0.0
    %1879 = vmatpush.msra.mxu0 0.0
    %1880 = vmatpush.msra.mxu0 0.0
    %1881 = vmatpush.msra.mxu0 0.0
    %1882 = vmatpush.msra.mxu0 0.0
    %1883 = vmatpush.msra.mxu0 %v1863
    %1884 = vmatmul.f32.gmra.mxu0 %v1866
    %v1885 = vpop.f32.mrf.mxu0
    %v1886 = vadd.f32 0.0, %v1885
    %1887 = vdwg.mxu0
    %1888 = vrot.lane.b32.xlu0 %v173, 64
    %v1889 = vpop.permute.xlu0 %1888
    %v1892 = vsel %vm1067, %v1406, 0
    %1894 = vmatpush.msra.mxu0 0.0
    %1895 = vmatpush.msra.mxu0 0.0
    %1896 = vmatpush.msra.mxu0 0.0
    %1897 = vmatpush.msra.mxu0 0.0
    %1898 = vmatpush.msra.mxu0 0.0
    %1899 = vmatpush.msra.mxu0 0.0
    %1900 = vmatpush.msra.mxu0 0.0
    %1901 = vmatpush.msra.mxu0 0.0
    %1902 = vmatpush.msra.mxu0 0.0
    %1903 = vmatpush.msra.mxu0 0.0
    %1904 = vmatpush.msra.mxu0 0.0
    %1905 = vmatpush.msra.mxu0 0.0
    %1906 = vmatpush.msra.mxu0 0.0
    %1907 = vmatpush.msra.mxu0 0.0
    %1908 = vmatpush.msra.mxu0 0.0
    %1909 = vmatpush.msra.mxu0 %v1889
    %1910 = vmatmul.f32.gmra.mxu0 %v1892
    %v1911 = vpop.f32.mrf.mxu0
    %v1912 = vadd.f32 0.0, %v1911
    %1913 = vdwg.mxu0
    %1914 = vrot.lane.b32.xlu0 %v175, 64
    %v1915 = vpop.permute.xlu0 %1914
    %v1918 = vsel %vm1067, %v1407, 0
    %1920 = vmatpush.msra.mxu0 0.0
    %1921 = vmatpush.msra.mxu0 0.0
    %1922 = vmatpush.msra.mxu0 0.0
    %1923 = vmatpush.msra.mxu0 0.0
    %1924 = vmatpush.msra.mxu0 0.0
    %1925 = vmatpush.msra.mxu0 0.0
    %1926 = vmatpush.msra.mxu0 0.0
    %1927 = vmatpush.msra.mxu0 0.0
    %1928 = vmatpush.msra.mxu0 0.0
    %1929 = vmatpush.msra.mxu0 0.0
    %1930 = vmatpush.msra.mxu0 0.0
    %1931 = vmatpush.msra.mxu0 0.0
    %1932 = vmatpush.msra.mxu0 0.0
    %1933 = vmatpush.msra.mxu0 0.0
    %1934 = vmatpush.msra.mxu0 0.0
    %1935 = vmatpush.msra.mxu0 %v1915
    %1936 = vmatmul.f32.gmra.mxu0 %v1918
    %v1937 = vpop.f32.mrf.mxu0
    %v1938 = vadd.f32 0.0, %v1937
    %1939 = vdwg.mxu0
    %1940 = vrot.lane.b32.xlu0 %v177, 64
    %v1941 = vpop.permute.xlu0 %1940
    %v1944 = vsel %vm1067, %v1408, 0
    %1946 = vmatpush.msra.mxu0 0.0
    %1947 = vmatpush.msra.mxu0 0.0
    %1948 = vmatpush.msra.mxu0 0.0
    %1949 = vmatpush.msra.mxu0 0.0
    %1950 = vmatpush.msra.mxu0 0.0
    %1951 = vmatpush.msra.mxu0 0.0
    %1952 = vmatpush.msra.mxu0 0.0
    %1953 = vmatpush.msra.mxu0 0.0
    %1954 = vmatpush.msra.mxu0 0.0
    %1955 = vmatpush.msra.mxu0 0.0
    %1956 = vmatpush.msra.mxu0 0.0
    %1957 = vmatpush.msra.mxu0 0.0
    %1958 = vmatpush.msra.mxu0 0.0
    %1959 = vmatpush.msra.mxu0 0.0
    %1960 = vmatpush.msra.mxu0 0.0
    %1961 = vmatpush.msra.mxu0 %v1941
    %1962 = vmatmul.f32.gmra.mxu0 %v1944
    %v1963 = vpop.f32.mrf.mxu0
    %v1964 = vadd.f32 0.0, %v1963
    %1965 = vdwg.mxu0
    %1966 = vrot.lane.b32.xlu0 %v179, 64
    %v1967 = vpop.permute.xlu0 %1966
    %v1970 = vsel %vm1067, %v1409, 0
    %1972 = vmatpush.msra.mxu0 0.0
    %1973 = vmatpush.msra.mxu0 0.0
    %1974 = vmatpush.msra.mxu0 0.0
    %1975 = vmatpush.msra.mxu0 0.0
    %1976 = vmatpush.msra.mxu0 0.0
    %1977 = vmatpush.msra.mxu0 0.0
    %1978 = vmatpush.msra.mxu0 0.0
    %1979 = vmatpush.msra.mxu0 0.0
    %1980 = vmatpush.msra.mxu0 0.0
    %1981 = vmatpush.msra.mxu0 0.0
    %1982 = vmatpush.msra.mxu0 0.0
    %1983 = vmatpush.msra.mxu0 0.0
    %1984 = vmatpush.msra.mxu0 0.0
    %1985 = vmatpush.msra.mxu0 0.0
    %1986 = vmatpush.msra.mxu0 0.0
    %1987 = vmatpush.msra.mxu0 %v1967
    %1988 = vmatmul.f32.gmra.mxu0 %v1970
    %v1989 = vpop.f32.mrf.mxu0
    %v1990 = vadd.f32 0.0, %v1989
    %1991 = vdwg.mxu0
    %1992 = vrot.lane.b32.xlu0 %v181, 64
    %v1993 = vpop.permute.xlu0 %1992
    %v1996 = vsel %vm1067, %v1410, 0
    %1998 = vmatpush.msra.mxu0 0.0
    %1999 = vmatpush.msra.mxu0 0.0
    %2000 = vmatpush.msra.mxu0 0.0
    %2001 = vmatpush.msra.mxu0 0.0
    %2002 = vmatpush.msra.mxu0 0.0
    %2003 = vmatpush.msra.mxu0 0.0
    %2004 = vmatpush.msra.mxu0 0.0
    %2005 = vmatpush.msra.mxu0 0.0
    %2006 = vmatpush.msra.mxu0 0.0
    %2007 = vmatpush.msra.mxu0 0.0
    %2008 = vmatpush.msra.mxu0 0.0
    %2009 = vmatpush.msra.mxu0 0.0
    %2010 = vmatpush.msra.mxu0 0.0
    %2011 = vmatpush.msra.mxu0 0.0
    %2012 = vmatpush.msra.mxu0 0.0
    %2013 = vmatpush.msra.mxu0 %v1993
    %2014 = vmatmul.f32.gmra.mxu0 %v1996
    %v2015 = vpop.f32.mrf.mxu0
    %v2016 = vadd.f32 0.0, %v2015
    %2017 = vdwg.mxu0
    %2018 = vrot.lane.b32.xlu0 %v183, 64
    %v2019 = vpop.permute.xlu0 %2018
    %v2022 = vsel %vm1067, %v1411, 0
    %2024 = vmatpush.msra.mxu0 0.0
    %2025 = vmatpush.msra.mxu0 0.0
    %2026 = vmatpush.msra.mxu0 0.0
    %2027 = vmatpush.msra.mxu0 0.0
    %2028 = vmatpush.msra.mxu0 0.0
    %2029 = vmatpush.msra.mxu0 0.0
    %2030 = vmatpush.msra.mxu0 0.0
    %2031 = vmatpush.msra.mxu0 0.0
    %2032 = vmatpush.msra.mxu0 0.0
    %2033 = vmatpush.msra.mxu0 0.0
    %2034 = vmatpush.msra.mxu0 0.0
    %2035 = vmatpush.msra.mxu0 0.0
    %2036 = vmatpush.msra.mxu0 0.0
    %2037 = vmatpush.msra.mxu0 0.0
    %2038 = vmatpush.msra.mxu0 0.0
    %2039 = vmatpush.msra.mxu0 %v2019
    %2040 = vmatmul.f32.gmra.mxu0 %v2022
    %v2041 = vpop.f32.mrf.mxu0
    %v2042 = vadd.f32 0.0, %v2041
    %2043 = vdwg.mxu0
    %2044 = vrot.lane.b32.xlu0 %v185, 64
    %v2045 = vpop.permute.xlu0 %2044
    %v2048 = vsel %vm1067, %v1412, 0
    %2050 = vmatpush.msra.mxu0 0.0
    %2051 = vmatpush.msra.mxu0 0.0
    %2052 = vmatpush.msra.mxu0 0.0
    %2053 = vmatpush.msra.mxu0 0.0
    %2054 = vmatpush.msra.mxu0 0.0
    %2055 = vmatpush.msra.mxu0 0.0
    %2056 = vmatpush.msra.mxu0 0.0
    %2057 = vmatpush.msra.mxu0 0.0
    %2058 = vmatpush.msra.mxu0 0.0
    %2059 = vmatpush.msra.mxu0 0.0
    %2060 = vmatpush.msra.mxu0 0.0
    %2061 = vmatpush.msra.mxu0 0.0
    %2062 = vmatpush.msra.mxu0 0.0
    %2063 = vmatpush.msra.mxu0 0.0
    %2064 = vmatpush.msra.mxu0 0.0
    %2065 = vmatpush.msra.mxu0 %v2045
    %2066 = vmatmul.f32.gmra.mxu0 %v2048
    %v2067 = vpop.f32.mrf.mxu0
    %v2068 = vadd.f32 0.0, %v2067
    %2069 = vdwg.mxu0
    %2070 = vrot.lane.b32.xlu0 %v187, 64
    %v2071 = vpop.permute.xlu0 %2070
    %v2074 = vsel %vm1067, %v1413, 0
    %2076 = vmatpush.msra.mxu0 0.0
    %2077 = vmatpush.msra.mxu0 0.0
    %2078 = vmatpush.msra.mxu0 0.0
    %2079 = vmatpush.msra.mxu0 0.0
    %2080 = vmatpush.msra.mxu0 0.0
    %2081 = vmatpush.msra.mxu0 0.0
    %2082 = vmatpush.msra.mxu0 0.0
    %2083 = vmatpush.msra.mxu0 0.0
    %2084 = vmatpush.msra.mxu0 0.0
    %2085 = vmatpush.msra.mxu0 0.0
    %2086 = vmatpush.msra.mxu0 0.0
    %2087 = vmatpush.msra.mxu0 0.0
    %2088 = vmatpush.msra.mxu0 0.0
    %2089 = vmatpush.msra.mxu0 0.0
    %2090 = vmatpush.msra.mxu0 0.0
    %2091 = vmatpush.msra.mxu0 %v2071
    %2092 = vmatmul.f32.gmra.mxu0 %v2074
    %v2093 = vpop.f32.mrf.mxu0
    %v2094 = vadd.f32 0.0, %v2093
    %2095 = vdwg.mxu0
    %2096 = vrot.lane.b32.xlu0 %v189, 64
    %v2097 = vpop.permute.xlu0 %2096
    %v2100 = vsel %vm1067, %v1414, 0
    %2102 = vmatpush.msra.mxu0 0.0
    %2103 = vmatpush.msra.mxu0 0.0
    %2104 = vmatpush.msra.mxu0 0.0
    %2105 = vmatpush.msra.mxu0 0.0
    %2106 = vmatpush.msra.mxu0 0.0
    %2107 = vmatpush.msra.mxu0 0.0
    %2108 = vmatpush.msra.mxu0 0.0
    %2109 = vmatpush.msra.mxu0 0.0
    %2110 = vmatpush.msra.mxu0 0.0
    %2111 = vmatpush.msra.mxu0 0.0
    %2112 = vmatpush.msra.mxu0 0.0
    %2113 = vmatpush.msra.mxu0 0.0
    %2114 = vmatpush.msra.mxu0 0.0
    %2115 = vmatpush.msra.mxu0 0.0
    %2116 = vmatpush.msra.mxu0 0.0
    %2117 = vmatpush.msra.mxu0 %v2097
    %2118 = vmatmul.f32.gmra.mxu0 %v2100
    %v2119 = vpop.f32.mrf.mxu0
    %v2120 = vadd.f32 0.0, %v2119
    %2121 = vdwg.mxu0
    %2122 = vrot.lane.b32.xlu0 %v191, 64
    %v2123 = vpop.permute.xlu0 %2122
    %v2126 = vsel %vm1067, %v1415, 0
    %2128 = vmatpush.msra.mxu0 0.0
    %2129 = vmatpush.msra.mxu0 0.0
    %2130 = vmatpush.msra.mxu0 0.0
    %2131 = vmatpush.msra.mxu0 0.0
    %2132 = vmatpush.msra.mxu0 0.0
    %2133 = vmatpush.msra.mxu0 0.0
    %2134 = vmatpush.msra.mxu0 0.0
    %2135 = vmatpush.msra.mxu0 0.0
    %2136 = vmatpush.msra.mxu0 0.0
    %2137 = vmatpush.msra.mxu0 0.0
    %2138 = vmatpush.msra.mxu0 0.0
    %2139 = vmatpush.msra.mxu0 0.0
    %2140 = vmatpush.msra.mxu0 0.0
    %2141 = vmatpush.msra.mxu0 0.0
    %2142 = vmatpush.msra.mxu0 0.0
    %2143 = vmatpush.msra.mxu0 %v2123
    %2144 = vmatmul.f32.gmra.mxu0 %v2126
    %v2145 = vpop.f32.mrf.mxu0
    %v2146 = vadd.f32 0.0, %v2145
    %2147 = vdwg.mxu0
    %2148 = vrot.lane.b32.xlu0 %v193, 64
    %v2149 = vpop.permute.xlu0 %2148
    %v2152 = vsel %vm1067, %v1416, 0
    %2154 = vmatpush.msra.mxu0 0.0
    %2155 = vmatpush.msra.mxu0 0.0
    %2156 = vmatpush.msra.mxu0 0.0
    %2157 = vmatpush.msra.mxu0 0.0
    %2158 = vmatpush.msra.mxu0 0.0
    %2159 = vmatpush.msra.mxu0 0.0
    %2160 = vmatpush.msra.mxu0 0.0
    %2161 = vmatpush.msra.mxu0 0.0
    %2162 = vmatpush.msra.mxu0 0.0
    %2163 = vmatpush.msra.mxu0 0.0
    %2164 = vmatpush.msra.mxu0 0.0
    %2165 = vmatpush.msra.mxu0 0.0
    %2166 = vmatpush.msra.mxu0 0.0
    %2167 = vmatpush.msra.mxu0 0.0
    %2168 = vmatpush.msra.mxu0 0.0
    %2169 = vmatpush.msra.mxu0 %v2149
    %2170 = vmatmul.f32.gmra.mxu0 %v2152
    %v2171 = vpop.f32.mrf.mxu0
    %v2172 = vadd.f32 0.0, %v2171
    %2173 = vdwg.mxu0
    %2174 = vrot.lane.b32.xlu0 %v195, 64
    %v2175 = vpop.permute.xlu0 %2174
    %v2178 = vsel %vm1067, %v1417, 0
    %2180 = vmatpush.msra.mxu0 0.0
    %2181 = vmatpush.msra.mxu0 0.0
    %2182 = vmatpush.msra.mxu0 0.0
    %2183 = vmatpush.msra.mxu0 0.0
    %2184 = vmatpush.msra.mxu0 0.0
    %2185 = vmatpush.msra.mxu0 0.0
    %2186 = vmatpush.msra.mxu0 0.0
    %2187 = vmatpush.msra.mxu0 0.0
    %2188 = vmatpush.msra.mxu0 0.0
    %2189 = vmatpush.msra.mxu0 0.0
    %2190 = vmatpush.msra.mxu0 0.0
    %2191 = vmatpush.msra.mxu0 0.0
    %2192 = vmatpush.msra.mxu0 0.0
    %2193 = vmatpush.msra.mxu0 0.0
    %2194 = vmatpush.msra.mxu0 0.0
    %2195 = vmatpush.msra.mxu0 %v2175
    %2196 = vmatmul.f32.gmra.mxu0 %v2178
    %v2197 = vpop.f32.mrf.mxu0
    %v2198 = vadd.f32 0.0, %v2197
    %2199 = vdwg.mxu0
    %2200 = vrot.lane.b32.xlu0 %v197, 64
    %v2201 = vpop.permute.xlu0 %2200
    %v2204 = vsel %vm1067, %v1418, 0
    %2206 = vmatpush.msra.mxu0 0.0
    %2207 = vmatpush.msra.mxu0 0.0
    %2208 = vmatpush.msra.mxu0 0.0
    %2209 = vmatpush.msra.mxu0 0.0
    %2210 = vmatpush.msra.mxu0 0.0
    %2211 = vmatpush.msra.mxu0 0.0
    %2212 = vmatpush.msra.mxu0 0.0
    %2213 = vmatpush.msra.mxu0 0.0
    %2214 = vmatpush.msra.mxu0 0.0
    %2215 = vmatpush.msra.mxu0 0.0
    %2216 = vmatpush.msra.mxu0 0.0
    %2217 = vmatpush.msra.mxu0 0.0
    %2218 = vmatpush.msra.mxu0 0.0
    %2219 = vmatpush.msra.mxu0 0.0
    %2220 = vmatpush.msra.mxu0 0.0
    %2221 = vmatpush.msra.mxu0 %v2201
    %2222 = vmatmul.f32.gmra.mxu0 %v2204
    %v2223 = vpop.f32.mrf.mxu0
    %v2224 = vadd.f32 0.0, %v2223
    %2225 = vdwg.mxu0
    %2226 = vrot.lane.b32.xlu0 %v199, 64
    %v2227 = vpop.permute.xlu0 %2226
    %v2230 = vsel %vm1067, %v1419, 0
    %2232 = vmatpush.msra.mxu0 0.0
    %2233 = vmatpush.msra.mxu0 0.0
    %2234 = vmatpush.msra.mxu0 0.0
    %2235 = vmatpush.msra.mxu0 0.0
    %2236 = vmatpush.msra.mxu0 0.0
    %2237 = vmatpush.msra.mxu0 0.0
    %2238 = vmatpush.msra.mxu0 0.0
    %2239 = vmatpush.msra.mxu0 0.0
    %2240 = vmatpush.msra.mxu0 0.0
    %2241 = vmatpush.msra.mxu0 0.0
    %2242 = vmatpush.msra.mxu0 0.0
    %2243 = vmatpush.msra.mxu0 0.0
    %2244 = vmatpush.msra.mxu0 0.0
    %2245 = vmatpush.msra.mxu0 0.0
    %2246 = vmatpush.msra.mxu0 0.0
    %2247 = vmatpush.msra.mxu0 %v2227
    %2248 = vmatmul.f32.gmra.mxu0 %v2230
    %v2249 = vpop.f32.mrf.mxu0
    %v2250 = vadd.f32 0.0, %v2249
    %2251 = vdwg.mxu0
    %2268 = vrot.lane.b32.xlu0 %v1860, 16
    %v2269 = vpop.permute.xlu0 %2268
    %2270 = vrot.lane.b32.xlu0 %v1886, 16
    %v2271 = vpop.permute.xlu0 %2270
    %2272 = vrot.lane.b32.xlu0 %v1912, 16
    %v2273 = vpop.permute.xlu0 %2272
    %2274 = vrot.lane.b32.xlu0 %v1938, 16
    %v2275 = vpop.permute.xlu0 %2274
    %2276 = vrot.lane.b32.xlu0 %v1964, 16
    %v2277 = vpop.permute.xlu0 %2276
    %2278 = vrot.lane.b32.xlu0 %v1990, 16
    %v2279 = vpop.permute.xlu0 %2278
    %2280 = vrot.lane.b32.xlu0 %v2016, 16
    %v2281 = vpop.permute.xlu0 %2280
    %2282 = vrot.lane.b32.xlu0 %v2042, 16
    %v2283 = vpop.permute.xlu0 %2282
    %2284 = vrot.lane.b32.xlu0 %v2068, 16
    %v2285 = vpop.permute.xlu0 %2284
    %2286 = vrot.lane.b32.xlu0 %v2094, 16
    %v2287 = vpop.permute.xlu0 %2286
    %2288 = vrot.lane.b32.xlu0 %v2120, 16
    %v2289 = vpop.permute.xlu0 %2288
    %2290 = vrot.lane.b32.xlu0 %v2146, 16
    %v2291 = vpop.permute.xlu0 %2290
    %2292 = vrot.lane.b32.xlu0 %v2172, 16
    %v2293 = vpop.permute.xlu0 %2292
    %2294 = vrot.lane.b32.xlu0 %v2198, 16
    %v2295 = vpop.permute.xlu0 %2294
    %2296 = vrot.lane.b32.xlu0 %v2224, 16
    %v2297 = vpop.permute.xlu0 %2296
    %2298 = vrot.lane.b32.xlu0 %v2250, 16
    %v2299 = vpop.permute.xlu0 %2298
    %v2316 = vsel %vm202, %v1444, %v2269
    %v2317 = vsel %vm202, %v1470, %v2271
    %v2318 = vsel %vm202, %v1496, %v2273
    %v2319 = vsel %vm202, %v1522, %v2275
    %v2320 = vsel %vm202, %v1548, %v2277
    %v2321 = vsel %vm202, %v1574, %v2279
    %v2322 = vsel %vm202, %v1600, %v2281
    %v2323 = vsel %vm202, %v1626, %v2283
    %v2324 = vsel %vm202, %v1652, %v2285
    %v2325 = vsel %vm202, %v1678, %v2287
    %v2326 = vsel %vm202, %v1704, %v2289
    %v2327 = vsel %vm202, %v1730, %v2291
    %v2328 = vsel %vm202, %v1756, %v2293
    %v2329 = vsel %vm202, %v1782, %v2295
    %v2330 = vsel %vm202, %v1808, %v2297
    %v2331 = vsel %vm202, %v1834, %v2299
    %v2332 = vld [vmem:[%s3] sm:$0xff]
    %v2333 = vld [vmem:[%s3 + $0x8] sm:$0xff]
    %v2334 = vld [vmem:[%s3 + $0x10] sm:$0xff]
    %v2335 = vld [vmem:[%s3 + $0x18] sm:$0xff]
    %v2337 = vsel %vm38, %v2316, 0
    %v2340 = vsel %vm38, %v2317, 0
    %v2343 = vsel %vm38, %v2318, 0
    %v2346 = vsel %vm38, %v2319, 0
    %v2349 = vsel %vm38, %v2320, 0
    %v2352 = vsel %vm38, %v2321, 0
    %v2355 = vsel %vm38, %v2322, 0
    %v2358 = vsel %vm38, %v2323, 0
    %v2361 = vsel %vm38, %v2324, 0
    %v2364 = vsel %vm38, %v2325, 0
    %v2367 = vsel %vm38, %v2326, 0
    %v2370 = vsel %vm38, %v2327, 0
    %v2373 = vsel %vm38, %v2328, 0
    %v2376 = vsel %vm38, %v2329, 0
    %v2379 = vsel %vm38, %v2330, 0
    %v2382 = vsel %vm38, %v2331, 0
    %2384 = vmatpush.msra.mxu0 0.0
    %2385 = vmatpush.msra.mxu0 0.0
    %2386 = vmatpush.msra.mxu0 0.0
    %2387 = vmatpush.msra.mxu0 0.0
    %2388 = vmatpush.msra.mxu0 0.0
    %2389 = vmatpush.msra.mxu0 0.0
    %2390 = vmatpush.msra.mxu0 0.0
    %2391 = vmatpush.msra.mxu0 0.0
    %2392 = vmatpush.msra.mxu0 0.0
    %2393 = vmatpush.msra.mxu0 0.0
    %2394 = vmatpush.msra.mxu0 0.0
    %2395 = vmatpush.msra.mxu0 0.0
    %2396 = vmatpush.msra.mxu0 %v2335
    %2397 = vmatpush.msra.mxu0 %v2334
    %2398 = vmatpush.msra.mxu0 %v2333
    %2399 = vmatpush.msra.mxu0 %v2332
    %2400 = vmatmul.f32.gmra.mxu0 %v2337
    %v2401 = vpop.f32.mrf.mxu0
    %v2402 = vadd.f32 0.0, %v2401
    %2403 = vmatmul.f32.gmra.mxu0 %v2340
    %v2404 = vpop.f32.mrf.mxu0
    %v2405 = vadd.f32 0.0, %v2404
    %2406 = vmatmul.f32.gmra.mxu0 %v2343
    %v2407 = vpop.f32.mrf.mxu0
    %v2408 = vadd.f32 0.0, %v2407
    %2409 = vmatmul.f32.gmra.mxu0 %v2346
    %v2410 = vpop.f32.mrf.mxu0
    %v2411 = vadd.f32 0.0, %v2410
    %2412 = vmatmul.f32.gmra.mxu0 %v2349
    %v2413 = vpop.f32.mrf.mxu0
    %v2414 = vadd.f32 0.0, %v2413
    %2415 = vmatmul.f32.gmra.mxu0 %v2352
    %v2416 = vpop.f32.mrf.mxu0
    %v2417 = vadd.f32 0.0, %v2416
    %2418 = vmatmul.f32.gmra.mxu0 %v2355
    %v2419 = vpop.f32.mrf.mxu0
    %v2420 = vadd.f32 0.0, %v2419
    %2421 = vmatmul.f32.gmra.mxu0 %v2358
    %v2422 = vpop.f32.mrf.mxu0
    %v2423 = vadd.f32 0.0, %v2422
    %2424 = vmatmul.f32.gmra.mxu0 %v2361
    %v2425 = vpop.f32.mrf.mxu0
    %v2426 = vadd.f32 0.0, %v2425
    %2427 = vmatmul.f32.gmra.mxu0 %v2364
    %v2428 = vpop.f32.mrf.mxu0
    %v2429 = vadd.f32 0.0, %v2428
    %2430 = vmatmul.f32.gmra.mxu0 %v2367
    %v2431 = vpop.f32.mrf.mxu0
    %v2432 = vadd.f32 0.0, %v2431
    %2433 = vmatmul.f32.gmra.mxu0 %v2370
    %v2434 = vpop.f32.mrf.mxu0
    %v2435 = vadd.f32 0.0, %v2434
    %2436 = vmatmul.f32.gmra.mxu0 %v2373
    %v2437 = vpop.f32.mrf.mxu0
    %v2438 = vadd.f32 0.0, %v2437
    %2439 = vmatmul.f32.gmra.mxu0 %v2376
    %v2440 = vpop.f32.mrf.mxu0
    %v2441 = vadd.f32 0.0, %v2440
    %2442 = vmatmul.f32.gmra.mxu0 %v2379
    %v2443 = vpop.f32.mrf.mxu0
    %v2444 = vadd.f32 0.0, %v2443
    %2445 = vmatmul.f32.gmra.mxu0 %v2382
    %v2446 = vpop.f32.mrf.mxu0
    %v2447 = vadd.f32 0.0, %v2446
    %2448 = vdwg.mxu0
    %2449 = vst.msk [vmem:[#allocation2] sm:$0xff] %vm38, %v2402
    %2450 = vst.msk [vmem:[#allocation2 + $0x8] sm:$0xff] %vm38, %v2405
    %2451 = vst.msk [vmem:[#allocation2 + $0x10] sm:$0xff] %vm38, %v2408
    %2452 = vst.msk [vmem:[#allocation2 + $0x18] sm:$0xff] %vm38, %v2411
    %2453 = vst.msk [vmem:[#allocation2 + $0x20] sm:$0xff] %vm38, %v2414
    %2454 = vst.msk [vmem:[#allocation2 + $0x28] sm:$0xff] %vm38, %v2417
    %2455 = vst.msk [vmem:[#allocation2 + $0x30] sm:$0xff] %vm38, %v2420
    %2456 = vst.msk [vmem:[#allocation2 + $0x38] sm:$0xff] %vm38, %v2423
    %2457 = vst.msk [vmem:[#allocation2 + $0x40] sm:$0xff] %vm38, %v2426
    %2458 = vst.msk [vmem:[#allocation2 + $0x48] sm:$0xff] %vm38, %v2429
    %2459 = vst.msk [vmem:[#allocation2 + $0x50] sm:$0xff] %vm38, %v2432
    %2460 = vst.msk [vmem:[#allocation2 + $0x58] sm:$0xff] %vm38, %v2435
    %2461 = vst.msk [vmem:[#allocation2 + $0x60] sm:$0xff] %vm38, %v2438
    %2462 = vst.msk [vmem:[#allocation2 + $0x68] sm:$0xff] %vm38, %v2441
    %2463 = vst.msk [vmem:[#allocation2 + $0x70] sm:$0xff] %vm38, %v2444
    %2464 = vst.msk [vmem:[#allocation2 + $0x78] sm:$0xff] %vm38, %v2447
    // Predicated region
    $region18: #{window_attention.1} parent=1 // pred_check
      _
    $region19: #{window_attention.1} parent=1 // pred_check_branch
      %2466 = sbr.rel (0) target = $region21
    $region20: #{window_attention.1} parent=1 // pred_region
      %2468 = vsyncadd [#allocation3], 0
      %s2469 = sshll.u32 [#allocation2], 4
      %s2470 = int_to_ptr.vmem [resolvable:$true] %s2469
      %s2471 = sshll.u32 %s4, 4
      %s2472 = int_to_ptr.hbm [resolvable:$true] %s2471
      %2477 = dma.vmem_to_hbm [thread:$0]  %s2470, 2048, %s2472, [#allocation3], 128, 128, 8
    $region21: #{window_attention.1} parent=1 // pred_fallthru
      _
    // Predicated region
    $region22: #{window_attention.1} parent=1 // pred_check
      _
    $region23: #{window_attention.1} parent=1 // pred_check_branch
      %2479 = sbr.rel (0) target = $region25
    $region24: #{window_attention.1} parent=1 // pred_region
      %2481 = dma.done [#allocation3], 2048
    $region25: #{window_attention.1} parent=1 // pred_fallthru
      _
    %2482 = vsyncpa [#allocation3], 1

</llo_original>
